<compile_context>
chip_gen: v7x
topology: tpu7x:2x2x1
jax: 0.10.0
libtpu: 0.0.40
codegen_flags: <defaults>
</compile_context>

<pallas_src>
import functools

import jax
import jax.numpy as jnp
from jax import lax
from jax.experimental import pallas as pl
from jax.experimental.pallas import tpu as pltpu


def _round_up(v, m):
    return ((v + m - 1) // m) * m


def _pick_block_rows(b, row_bytes, target_bytes=8 << 20, hi=512):
    """Pillars per grid step: big enough to amortize the ~0.35us/step pipeline
    overhead, small enough that double-buffered blocks stay at a few MiB."""
    p = max(8, min(hi, target_bytes // max(row_bytes, 1)))
    p = (p // 8) * 8
    if b > p:
        return p
    # Whole batch fits in one block: split into >= 2 grid steps when the batch
    # is large enough so both v7x TensorCores get work on the "parallel" axis.
    if b >= 16:
        return min(p, _round_up(-(-b // 2), 8))
    return b


def _pick_group(n_pts, c_in, k_target=128):
    """Points fused per last-layer matmul so K = group*C_in approaches the MXU
    depth (128 on v5e, half depth on v6e/v7x) without exceeding it."""
    g = 1
    for cand in range(1, n_pts + 1):
        if n_pts % cand == 0 and cand * c_in <= k_target:
            g = cand
    return g


@functools.lru_cache(maxsize=None)
def _structural_consts(n_pts, c_hid, dtype_name):
    """Weight-independent structural matrices, cached across calls."""
    dt = jnp.dtype(dtype_name)
    eye_n = jnp.eye(n_pts, dtype=dt)
    # S[o', o*N + n] = delta(o', o): exact 0/1 broadcast of the channel max.
    s_mat = jnp.repeat(jnp.eye(c_hid, dtype=dt), n_pts, axis=1)
    return eye_n, s_mat


@functools.lru_cache(maxsize=None)
def _mask_expander(n_pts, c_in, dtype_name):
    """T[n', c*N + n] = delta(n', n): expands a per-point keep mask to the
    channel-major (C_in*N) lane layout with one tiny exact-0/1 MXU matmul."""
    dt = jnp.dtype(dtype_name)
    return jnp.tile(jnp.eye(n_pts, dtype=dt), (1, c_in))


# --------------------------------------------------------------------------
# Non-last layer kernel: out block = (P, 2*C_hid*N) lane-dense slab
# --------------------------------------------------------------------------
def _pfn_nonlast_kernel(*refs, c_hid, n_pts, has_mask):
    if has_mask:
        (x_ref, keep_ref, t_ref, a_om_ref, a_nm_ref, s_ref,
         b_om_ref, b_c_ref, o_ref) = refs
    else:
        (x_ref, a_om_ref, a_nm_ref, s_ref, b_om_ref, b_c_ref, o_ref) = refs

    x = x_ref[...]                                      # (P, C_in*N), MXU dtype
    if has_mask:
        # keep (P, N) 0/1 -> (P, C_in*N) lane layout via an exact 0/1 matmul.
        keep_t = jnp.dot(keep_ref[...], t_ref[...],
                         preferred_element_type=jnp.float32)
        x = jnp.where(keep_t > 0.5, x, jnp.zeros_like(x))

    hw = c_hid * n_pts

    # 1x1 conv on the MXU; columns already in the output's own channel-major,
    # point-minor flattened lane order -> one wide 128-aligned store.
    z_om = jnp.dot(x, a_om_ref[...], preferred_element_type=jnp.float32)
    y = jnp.maximum(z_om + b_om_ref[...], 0.0)          # folded BN bias + ReLU
    o_ref[:, :hw] = y.astype(o_ref.dtype)

    # Point-major copy of the same conv feeds a halving tree of contiguous
    # lane slices (VPU) for the per-pillar max over points.
    z_nm = jnp.dot(x, a_nm_ref[...], preferred_element_type=jnp.float32)
    m = z_nm
    w = n_pts
    while w > 1:
        half = (w + 1) // 2
        m = jnp.maximum(m[:, :half * c_hid], m[:, (w - half) * c_hid:w * c_hid])
        w = half
    # ReLU(max + bias) == max over points of ReLU(z + bias)  (ReLU monotone).
    y_max = jnp.maximum(m + b_c_ref[...], 0.0)          # (P, C_hid) f32

    # Broadcast the channel max over its N points with an exact 0/1 matmul in
    # the MXU dtype (no f32 multi-pass).  For a sub-f32 out_dtype the two
    # output halves are bit-consistent (monotone rounding commutes with max).
    y_big = jnp.dot(y_max.astype(s_ref.dtype), s_ref[...],
                    preferred_element_type=jnp.float32)
    o_ref[:, hw:] = y_big.astype(o_ref.dtype)


# --------------------------------------------------------------------------
# Last layer kernel: out block = (P, C_hid); chunked block-diagonal matmuls
# --------------------------------------------------------------------------
def _pfn_last_kernel(x_ref, w_ref, b_ref, o_ref, *, c_in, c_hid, n_pts, group):
    gk = group * c_in                       # K of one chunk matmul
    n_chunks = n_pts // group
    w = w_ref[...]                          # (G*C_in, G*C_hid) block-diagonal

    def chunk_max(xc):                      # (P, G*C_in) -> (P, C_hid)
        z = jnp.dot(xc, w, preferred_element_type=jnp.float32)
        m = z[:, :c_hid]
        for g in range(1, group):
            m = jnp.maximum(m, z[:, g * c_hid:(g + 1) * c_hid])
        return m

    acc = chunk_max(x_ref[:, :gk])
    if n_chunks > 1:
        if gk % 128 == 0:
            # fori_loop with a running max bounds live ranges; chunk starts
            # are 128-lane-aligned dynamic slices.
            def body(j, a):
                start = pl.multiple_of(j * gk, 128)
                return jnp.maximum(a, chunk_max(x_ref[:, pl.ds(start, gk)]))
            acc = lax.fori_loop(1, n_chunks, body, acc, unroll=True)
        else:
            for j in range(1, n_chunks):    # static slices for odd C_in
                acc = jnp.maximum(acc, chunk_max(x_ref[:, j * gk:(j + 1) * gk]))
    # ReLU(max + bias) == max over points of ReLU(z + bias)  (ReLU monotone).
    o_ref[...] = jnp.maximum(acc + b_ref[...], 0.0).astype(o_ref.dtype)


# --------------------------------------------------------------------------
# Wrapper
# --------------------------------------------------------------------------
def pfn_layer_bn(x, weight, gamma, beta, running_mean, running_var,
                 mask=None, last_layer=False, eps=1e-3,
                 mxu_dtype=jnp.bfloat16, out_dtype=None):
    """PFNLayerBN forward (eval-mode BatchNorm folded into scale/bias).

    x:      (B, C_in, N)  -- B pillars, N points each (Conv1d NCW layout)
    weight: (C_hid, C_in) -- Conv1d(k=1, bias=False) weight
    gamma/beta/running_mean/running_var: (C_hid,) -- BatchNorm1d params
    mask:   optional (B, N) bool, True -> zero that point before the conv
    Returns (B, C_hid) if last_layer else (B, 2*C_hid, N).
    out_dtype defaults to mxu_dtype (bf16) for the non-last layer (its output
    is writeback-bound and is immediately downcast by the next layer) and to
    float32 for the last layer; pass out_dtype explicitly to override.
    """
    B, C_in, N = x.shape
    C_hid = weight.shape[0]
    f32 = jnp.float32
    if out_dtype is None:
        out_dtype = f32 if last_layer else mxu_dtype

    # Fold BatchNorm (eval) into the conv weight (scale) and a bias, in f32.
    scale = gamma.astype(f32) / jnp.sqrt(running_var.astype(f32) + eps)
    bias = beta.astype(f32) - running_mean.astype(f32) * scale
    wt = jnp.transpose(weight.astype(f32) * scale[:, None])       # (C_in, C_hid)
    wt_b = wt.astype(mxu_dtype)

    has_mask = mask is not None
    # VMEM use is ~7 MiB at P=512 (see header), so defaults are fine on all of
    # v5e/v6e/v7x; no vmem_limit override, constants double-buffer is < 2.5 MiB.
    cparams = pltpu.CompilerParams(dimension_semantics=("parallel",))
    dtname = jnp.dtype(mxu_dtype).name

    # ---------------------------- last layer -----------------------------
    if last_layer:
        group = _pick_group(N, C_in)
        # masked_fill fuses for free into the (B,C,N)->(B,N*C) transpose+cast.
        x_m = jnp.where(mask[:, None, :], 0.0, x) if has_mask else x
        x_nm = jnp.transpose(x_m, (0, 2, 1)).reshape(B, N * C_in).astype(mxu_dtype)
        # Block-diagonal weight: one matmul handles `group` points at once.
        w_blk = jnp.kron(jnp.eye(group, dtype=mxu_dtype), wt_b)   # (G*C_in, G*C_hid)
        bias_row = bias[None, :]                                  # (1, C_hid)

        row_bytes = (N * C_in * jnp.dtype(mxu_dtype).itemsize
                     + C_hid * jnp.dtype(out_dtype).itemsize)
        P = _pick_block_rows(B, row_bytes)
        grid = (pl.cdiv(B, P),)

        kernel = functools.partial(_pfn_last_kernel, c_in=C_in, c_hid=C_hid,
                                   n_pts=N, group=group)
        return pl.pallas_call(
            kernel,
            out_shape=jax.ShapeDtypeStruct((B, C_hid), out_dtype),
            grid_spec=pltpu.PrefetchScalarGridSpec(
                num_scalar_prefetch=0, grid=grid,
                in_specs=[pl.BlockSpec((P, N * C_in), lambda i: (i, 0)),
                          pl.BlockSpec((group * C_in, group * C_hid),
                                       lambda i: (0, 0)),
                          pl.BlockSpec((1, C_hid), lambda i: (0, 0))],
                out_specs=pl.BlockSpec((P, C_hid), lambda i: (i, 0))),
            compiler_params=cparams,
        )(x_nm, w_blk, bias_row)

    # -------------------------- non-last layer ---------------------------
    eye_n, s_mat = _structural_consts(N, C_hid, dtname)
    # Free row-major reshape; downcast to the MXU dtype in the wrapper so the
    # kernel's input DMA (and its VMEM double buffer) is half-size.
    x_flat = x.reshape(B, C_in * N).astype(mxu_dtype)

    # a_om[c*N+n', o*N+n]     = W'[o,c] d(n,n')  -> channel-major output cols.
    a_om = jnp.kron(wt_b, eye_n)                                   # (C_in*N, C_hid*N)
    # a_nm[c*N+n', n*C_hid+o] = W'[o,c] d(n,n')  -> point-major output cols.
    a_nm = (wt_b[:, None, None, :] * eye_n[None, :, :, None]
            ).reshape(C_in * N, N * C_hid)
    bias_om = jnp.repeat(bias, N)[None, :]                         # (1, C_hid*N)
    bias_c = bias[None, :]                                         # (1, C_hid)

    out_row = 2 * C_hid * N * jnp.dtype(out_dtype).itemsize
    in_row = C_in * N * jnp.dtype(mxu_dtype).itemsize
    P = _pick_block_rows(B, out_row + in_row)
    grid = (pl.cdiv(B, P),)

    in_specs = [pl.BlockSpec((P, C_in * N), lambda i: (i, 0))]
    args = [x_flat]
    if has_mask:
        keep = jnp.logical_not(mask).astype(mxu_dtype)             # (B, N), 1 = keep
        t_exp = _mask_expander(N, C_in, dtname)                    # (N, C_in*N)
        in_specs += [pl.BlockSpec((P, N), lambda i: (i, 0)),
                     pl.BlockSpec((N, C_in * N), lambda i: (0, 0))]
        args += [keep, t_exp]
    in_specs += [
        pl.BlockSpec((C_in * N, C_hid * N), lambda i: (0, 0)),
        pl.BlockSpec((C_in * N, N * C_hid), lambda i: (0, 0)),
        pl.BlockSpec((C_hid, C_hid * N), lambda i: (0, 0)),
        pl.BlockSpec((1, C_hid * N), lambda i: (0, 0)),
        pl.BlockSpec((1, C_hid), lambda i: (0, 0)),
    ]
    args += [a_om, a_nm, s_mat, bias_om, bias_c]

    kernel = functools.partial(_pfn_nonlast_kernel, c_hid=C_hid, n_pts=N,
                               has_mask=has_mask)
    out2d = pl.pallas_call(
        kernel,
        out_shape=jax.ShapeDtypeStruct((B, 2 * C_hid * N), out_dtype),
        grid_spec=pltpu.PrefetchScalarGridSpec(
            num_scalar_prefetch=0, grid=grid,
            in_specs=in_specs,
            out_specs=pl.BlockSpec((P, 2 * C_hid * N), lambda i: (i, 0))),
        compiler_params=cparams,
    )(*args)
    # Free reshape back to the module's (B, 2*C_hid, N) layout.
    return out2d.reshape(B, 2 * C_hid, N)


# --------------------------------------------------------------------------
# Pure-JAX reference (mirrors the PyTorch module, eval-mode BN)
# --------------------------------------------------------------------------
def _reference(x, weight, gamma, beta, rmean, rvar, mask, last_layer, eps=1e-3):
    if mask is not None:
        x = jnp.where(mask[:, None, :], 0.0, x)
    y = jnp.einsum("oc,bcn->bon", weight, x)
    y = (y - rmean[None, :, None]) / jnp.sqrt(rvar[None, :, None] + eps)
    y = y * gamma[None, :, None] + beta[None, :, None]
    y = jnp.maximum(y, 0.0)
    y_max = jnp.max(y, axis=-1, keepdims=True)
    if last_layer:
        return y_max[:, :, 0]
    return jnp.concatenate([y, jnp.broadcast_to(y_max, y.shape)], axis=-2)


if __name__ == "__main__":
    key = jax.random.PRNGKey(0)
    ks = jax.random.split(key, 10)
    # bf16 MXU operands (f32 accumulation) and bf16 output vs f32 reference.
    ATOL = RTOL = 3e-2

    # --- PFNLayerBN(9, 64, last_layer=False) -> hidden = 32; B=2 pillars, N=32
    B, C_in, N = 2, 9, 32
    hidden = 64 // 2
    x = jax.random.normal(ks[0], (B, C_in, N), jnp.float32)
    mask = jax.random.bernoulli(ks[1], 0.25, (B, N))
    weight = jax.random.normal(ks[2], (hidden, C_in), jnp.float32) * 0.1
    gamma = 1.0 + 0.1 * jax.random.normal(ks[3], (hidden,), jnp.float32)
    beta = 0.1 * jax.random.normal(ks[4], (hidden,), jnp.float32)
    rmean = 0.05 * jax.random.normal(ks[5], (hidden,), jnp.float32)
    rvar = 1.0 + 0.1 * jax.random.uniform(ks[6], (hidden,), jnp.float32)

    for m in (mask, None):
        out = jax.block_until_ready(
            pfn_layer_bn(x, weight, gamma, beta, rmean, rvar,
                         mask=m, last_layer=False))
        ref = _reference(x, weight, gamma, beta, rmean, rvar, m, False)
        assert out.shape == (B, 2 * hidden, N), out.shape
        assert out.dtype == jnp.bfloat16, out.dtype
        out_f = out.astype(jnp.float32)
        assert jnp.allclose(out_f, ref, atol=ATOL, rtol=RTOL), \
            float(jnp.max(jnp.abs(out_f - ref)))

    # --- PFNLayerBN(64, 64, last_layer=True) -> hidden = 64
    C_in2, hidden2 = 2 * hidden, 64
    x2 = jax.random.normal(ks[7], (B, C_in2, N), jnp.float32)
    mask2 = jax.random.bernoulli(ks[8], 0.25, (B, N))
    w2 = jax.random.normal(ks[9], (hidden2, C_in2), jnp.float32) * 0.1
    g2 = jnp.ones((hidden2,), jnp.float32)
    b2 = jnp.zeros((hidden2,), jnp.float32)
    m2 = jnp.zeros((hidden2,), jnp.float32)
    v2 = jnp.ones((hidden2,), jnp.float32)

    for m in (mask2, None):
        out2 = jax.block_until_ready(
            pfn_layer_bn(x2, w2, g2, b2, m2, v2, mask=m, last_layer=True))
        ref2 = _reference(x2, w2, g2, b2, m2, v2, m, True)
        assert out2.shape == (B, hidden2), out2.shape
        out2_f = out2.astype(jnp.float32)
        assert jnp.allclose(out2_f, ref2, atol=ATOL, rtol=RTOL), \
            float(jnp.max(jnp.abs(out2_f - ref2)))

    print("KERNEL_OK")
</pallas_src>

<mosaic_0001>
module attributes {stable_mosaic.version = 11 : i64} {
  func.func @_pfn_nonlast_kernel(%arg0: i32, %arg1: memref<2x288xbf16, #tpu.memory_space<vmem>>, %arg2: memref<2x32xbf16, #tpu.memory_space<vmem>>, %arg3: memref<32x288xbf16, #tpu.memory_space<vmem>>, %arg4: memref<288x1024xbf16, #tpu.memory_space<vmem>>, %arg5: memref<288x1024xbf16, #tpu.memory_space<vmem>>, %arg6: memref<32x1024xbf16, #tpu.memory_space<vmem>>, %arg7: memref<1x1024xf32, #tpu.memory_space<vmem>>, %arg8: memref<1x32xf32, #tpu.memory_space<vmem>>, %arg9: memref<2x2048xbf16, #tpu.memory_space<vmem>>) attributes {dimension_semantics = [#tpu.dimension_semantics<parallel>], iteration_bounds = array<i64: 1>, scalar_prefetch = 0 : i64, scratch_operands = 0 : i64, tpu.core_type = #tpu.core_type<tc>, window_params = [{transform_indices = @transform_0, window_bounds = array<i64: 2, 288>}, {transform_indices = @transform_1, window_bounds = array<i64: 2, 32>}, {pipeline_mode = #tpu.pipeline_mode<synchronous>, transform_indices = @transform_2, window_bounds = array<i64: 32, 288>}, {pipeline_mode = #tpu.pipeline_mode<synchronous>, transform_indices = @transform_3, window_bounds = array<i64: 288, 1024>}, {pipeline_mode = #tpu.pipeline_mode<synchronous>, transform_indices = @transform_4, window_bounds = array<i64: 288, 1024>}, {pipeline_mode = #tpu.pipeline_mode<synchronous>, transform_indices = @transform_5, window_bounds = array<i64: 32, 1024>}, {pipeline_mode = #tpu.pipeline_mode<synchronous>, transform_indices = @transform_6, window_bounds = array<i64: 1, 1024>}, {pipeline_mode = #tpu.pipeline_mode<synchronous>, transform_indices = @transform_7, window_bounds = array<i64: 1, 32>}, {transform_indices = @transform_8, window_bounds = array<i64: 2, 2048>}]} {
    %c0 = arith.constant 0 : index
    %c0_0 = arith.constant 0 : index
    %0 = vector.load %arg1[%c0, %c0_0] : memref<2x288xbf16, #tpu.memory_space<vmem>>, vector<2x288xbf16>
    %c0_1 = arith.constant 0 : index
    %c0_2 = arith.constant 0 : index
    %1 = vector.load %arg2[%c0_1, %c0_2] : memref<2x32xbf16, #tpu.memory_space<vmem>>, vector<2x32xbf16>
    %c0_3 = arith.constant 0 : index
    %c0_4 = arith.constant 0 : index
    %2 = vector.load %arg3[%c0_3, %c0_4] : memref<32x288xbf16, #tpu.memory_space<vmem>>, vector<32x288xbf16>
    %cst = arith.constant dense<0.000000e+00> : vector<2x288xf32>
    %3 = tpu.matmul %1, %2, %cst {dimension_numbers = #tpu.dot_dimension_numbers<[1], [0], [0], [1], [0, 0, 1, 1], [], []>} : vector<2x32xbf16>, vector<32x288xbf16>, vector<2x288xf32> -> vector<2x288xf32>
    %cst_5 = arith.constant 5.000000e-01 : f32
    %4 = vector.broadcast %cst_5 : f32 to vector<2x288xf32>
    %5 = arith.cmpf ogt, %3, %4 : vector<2x288xf32>
    %cst_6 = arith.constant 0.000000e+00 : bf16
    %6 = vector.broadcast %cst_6 : bf16 to vector<2x288xbf16>
    %7 = arith.select %5, %0, %6 : vector<2x288xi1>, vector<2x288xbf16>
    %c0_7 = arith.constant 0 : index
    %c0_8 = arith.constant 0 : index
    %8 = vector.load %arg4[%c0_7, %c0_8] : memref<288x1024xbf16, #tpu.memory_space<vmem>>, vector<288x1024xbf16>
    %cst_9 = arith.constant dense<0.000000e+00> : vector<2x1024xf32>
    %9 = tpu.matmul %7, %8, %cst_9 {dimension_numbers = #tpu.dot_dimension_numbers<[1], [0], [0], [1], [0, 0, 1, 1], [], []>} : vector<2x288xbf16>, vector<288x1024xbf16>, vector<2x1024xf32> -> vector<2x1024xf32>
    %c0_10 = arith.constant 0 : index
    %c0_11 = arith.constant 0 : index
    %10 = vector.load %arg7[%c0_10, %c0_11] : memref<1x1024xf32, #tpu.memory_space<vmem>>, vector<1x1024xf32>
    %11 = vector.broadcast %10 : vector<1x1024xf32> to vector<2x1024xf32>
    %12 = arith.addf %9, %11 : vector<2x1024xf32>
    %cst_12 = arith.constant 0.000000e+00 : f32
    %13 = vector.broadcast %cst_12 : f32 to vector<2x1024xf32>
    %14 = arith.maximumf %12, %13 : vector<2x1024xf32>
    %15 = arith.truncf %14 : vector<2x1024xf32> to vector<2x1024xbf16>
    %c0_13 = arith.constant 0 : index
    %c0_14 = arith.constant 0 : index
    %16 = vector.load %arg9[%c0_13, %c0_14] : memref<2x2048xbf16, #tpu.memory_space<vmem>>, vector<2x1024xbf16>
    tpu.vector_store %arg9[%c0_13, %c0_14], %15 {strides = array<i32>} : memref<2x2048xbf16, #tpu.memory_space<vmem>>, vector<2x1024xbf16>,
    %c0_15 = arith.constant 0 : index
    %c0_16 = arith.constant 0 : index
    %17 = vector.load %arg5[%c0_15, %c0_16] : memref<288x1024xbf16, #tpu.memory_space<vmem>>, vector<288x1024xbf16>
    %cst_17 = arith.constant dense<0.000000e+00> : vector<2x1024xf32>
    %18 = tpu.matmul %7, %17, %cst_17 {dimension_numbers = #tpu.dot_dimension_numbers<[1], [0], [0], [1], [0, 0, 1, 1], [], []>} : vector<2x288xbf16>, vector<288x1024xbf16>, vector<2x1024xf32> -> vector<2x1024xf32>
    %19 = vector.extract_strided_slice %18 {offsets = [0, 0], sizes = [2, 512], strides = [1, 1]} : vector<2x1024xf32> to vector<2x512xf32>
    %20 = vector.extract_strided_slice %18 {offsets = [0, 512], sizes = [2, 512], strides = [1, 1]} : vector<2x1024xf32> to vector<2x512xf32>
    %21 = arith.maximumf %19, %20 : vector<2x512xf32>
    %22 = vector.extract_strided_slice %21 {offsets = [0, 0], sizes = [2, 256], strides = [1, 1]} : vector<2x512xf32> to vector<2x256xf32>
    %23 = vector.extract_strided_slice %21 {offsets = [0, 256], sizes = [2, 256], strides = [1, 1]} : vector<2x512xf32> to vector<2x256xf32>
    %24 = arith.maximumf %22, %23 : vector<2x256xf32>
    %25 = vector.extract_strided_slice %24 {offsets = [0, 0], sizes = [2, 128], strides = [1, 1]} : vector<2x256xf32> to vector<2x128xf32>
    %26 = vector.extract_strided_slice %24 {offsets = [0, 128], sizes = [2, 128], strides = [1, 1]} : vector<2x256xf32> to vector<2x128xf32>
    %27 = arith.maximumf %25, %26 : vector<2x128xf32>
    %28 = vector.extract_strided_slice %27 {offsets = [0, 0], sizes = [2, 64], strides = [1, 1]} : vector<2x128xf32> to vector<2x64xf32>
    %29 = vector.extract_strided_slice %27 {offsets = [0, 64], sizes = [2, 64], strides = [1, 1]} : vector<2x128xf32> to vector<2x64xf32>
    %30 = arith.maximumf %28, %29 : vector<2x64xf32>
    %31 = vector.extract_strided_slice %30 {offsets = [0, 0], sizes = [2, 32], strides = [1, 1]} : vector<2x64xf32> to vector<2x32xf32>
    %32 = vector.extract_strided_slice %30 {offsets = [0, 32], sizes = [2, 32], strides = [1, 1]} : vector<2x64xf32> to vector<2x32xf32>
    %33 = arith.maximumf %31, %32 : vector<2x32xf32>
    %c0_18 = arith.constant 0 : index
    %c0_19 = arith.constant 0 : index
    %34 = vector.load %arg8[%c0_18, %c0_19] : memref<1x32xf32, #tpu.memory_space<vmem>>, vector<1x32xf32>
    %35 = vector.broadcast %34 : vector<1x32xf32> to vector<2x32xf32>
    %36 = arith.addf %33, %35 : vector<2x32xf32>
    %cst_20 = arith.constant 0.000000e+00 : f32
    %37 = vector.broadcast %cst_20 : f32 to vector<2x32xf32>
    %38 = arith.maximumf %36, %37 : vector<2x32xf32>
    %39 = arith.truncf %38 : vector<2x32xf32> to vector<2x32xbf16>
    %c0_21 = arith.constant 0 : index
    %c0_22 = arith.constant 0 : index
    %40 = vector.load %arg6[%c0_21, %c0_22] : memref<32x1024xbf16, #tpu.memory_space<vmem>>, vector<32x1024xbf16>
    %cst_23 = arith.constant dense<0.000000e+00> : vector<2x1024xf32>
    %41 = tpu.matmul %39, %40, %cst_23 {dimension_numbers = #tpu.dot_dimension_numbers<[1], [0], [0], [1], [0, 0, 1, 1], [], []>} : vector<2x32xbf16>, vector<32x1024xbf16>, vector<2x1024xf32> -> vector<2x1024xf32>
    %42 = arith.truncf %41 : vector<2x1024xf32> to vector<2x1024xbf16>
    %c0_24 = arith.constant 0 : index
    %c1024 = arith.constant 1024 : index
    %43 = vector.load %arg9[%c0_24, %c1024] : memref<2x2048xbf16, #tpu.memory_space<vmem>>, vector<2x1024xbf16>
    tpu.vector_store %arg9[%c0_24, %c1024], %42 {strides = array<i32>} : memref<2x2048xbf16, #tpu.memory_space<vmem>>, vector<2x1024xbf16>,
    return
  }
  func.func @transform_0(%arg0: i32) -> (i32, i32) {
    %c0_i32 = arith.constant 0 : i32
    %c0_i32_0 = arith.constant 0 : i32
    return %arg0, %c0_i32 : i32, i32
  }
  func.func @transform_1(%arg0: i32) -> (i32, i32) {
    %c0_i32 = arith.constant 0 : i32
    %c0_i32_0 = arith.constant 0 : i32
    return %arg0, %c0_i32 : i32, i32
  }
  func.func @transform_2(%arg0: i32) -> (i32, i32) {
    %c0_i32 = arith.constant 0 : i32
    %c0_i32_0 = arith.constant 0 : i32
    %c0_i32_1 = arith.constant 0 : i32
    return %c0_i32, %c0_i32_0 : i32, i32
  }
  func.func @transform_3(%arg0: i32) -> (i32, i32) {
    %c0_i32 = arith.constant 0 : i32
    %c0_i32_0 = arith.constant 0 : i32
    %c0_i32_1 = arith.constant 0 : i32
    return %c0_i32, %c0_i32_0 : i32, i32
  }
  func.func @transform_4(%arg0: i32) -> (i32, i32) {
    %c0_i32 = arith.constant 0 : i32
    %c0_i32_0 = arith.constant 0 : i32
    %c0_i32_1 = arith.constant 0 : i32
    return %c0_i32, %c0_i32_0 : i32, i32
  }
  func.func @transform_5(%arg0: i32) -> (i32, i32) {
    %c0_i32 = arith.constant 0 : i32
    %c0_i32_0 = arith.constant 0 : i32
    %c0_i32_1 = arith.constant 0 : i32
    return %c0_i32, %c0_i32_0 : i32, i32
  }
  func.func @transform_6(%arg0: i32) -> (i32, i32) {
    %c0_i32 = arith.constant 0 : i32
    %c0_i32_0 = arith.constant 0 : i32
    %c0_i32_1 = arith.constant 0 : i32
    return %c0_i32, %c0_i32_0 : i32, i32
  }
  func.func @transform_7(%arg0: i32) -> (i32, i32) {
    %c0_i32 = arith.constant 0 : i32
    %c0_i32_0 = arith.constant 0 : i32
    %c0_i32_1 = arith.constant 0 : i32
    return %c0_i32, %c0_i32_0 : i32, i32
  }
  func.func @transform_8(%arg0: i32) -> (i32, i32) {
    %c0_i32 = arith.constant 0 : i32
    %c0_i32_0 = arith.constant 0 : i32
    return %arg0, %c0_i32 : i32, i32
  }
}

</mosaic_0001>

<llo_original>
// kernel: tpu_custom_call.1
$region0: #{tpu_custom_call.1}
  #allocation0 [shape = 'u32[]', space=smem, size = 0x4, offset = 0x4, fixed_abs, tag = 'smem constant byte address 0x4 - core index']
  #allocation1 [shape = 'u32[144,128]{1,0:T(1,128)}', space=vmem, size = 0x12000, scoped, tag = 'internal scratch']
  %s0 = inlined_call_operand.hbm [shape: bf16[2,288], index: 0, kind: input, shape index: {}]
  %s1 = inlined_call_operand.vmem [shape: bf16[2,32], index: 1, kind: input, shape index: {}]
  %s2 = inlined_call_operand.hbm [shape: bf16[32,288], index: 2, kind: input, shape index: {}]
  %s3 = inlined_call_operand.hbm [shape: bf16[288,1024], index: 3, kind: input, shape index: {}]
  %s4 = inlined_call_operand.hbm [shape: bf16[288,1024], index: 4, kind: input, shape index: {}]
  %s5 = inlined_call_operand.hbm [shape: bf16[32,1024], index: 5, kind: input, shape index: {}]
  %s6 = inlined_call_operand.vmem [shape: f32[1,1024], index: 6, kind: input, shape index: {}]
  %s7 = inlined_call_operand.vmem [shape: f32[1,32], index: 7, kind: input, shape index: {}]
  %s8 = inlined_call_operand.hbm [shape: bf16[2,2048], index: 8, kind: output, shape index: {}]
  %s9 = sld [smem:[#allocation0]]
  $region62: #{tpu_custom_call.1} parent=0
    _
  %s11 = ssub.s32 1, %s9
  %s12 = scalar_select 0, %s11, %s9
  $region1: #{tpu_custom_call.1} parent=0
    #allocation2 [shape = 'u8[1536]{0}', space=vmem, size = 0x800, scoped, tag = 'input window, operand 0, single buffered']
    #allocation3 [shape = 's32[1]{0}', space=sflag, size = 0x4, scoped, tag = 'scoped memory for tpu_custom_call.1']
    #allocation4 [shape = 's32[1]{0}', space=sflag, size = 0x4, scoped, tag = 'scoped memory for tpu_custom_call.1']
    #allocation5 [shape = 'u8[24576]{0}', space=vmem, size = 0x6000, scoped, tag = 'input window, operand 2, single buffered']
    #allocation6 [shape = 's32[1]{0}', space=sflag, size = 0x4, scoped, tag = 'scoped memory for tpu_custom_call.1']
    #allocation7 [shape = 'u8[589824]{0}', space=vmem, size = 0x90000, scoped, tag = 'input window, operand 3, single buffered']
    #allocation8 [shape = 'u8[589824]{0}', space=vmem, size = 0x90000, scoped, tag = 'input window, operand 4, single buffered']
    #allocation9 [shape = 's32[1]{0}', space=sflag, size = 0x4, scoped, tag = 'scoped memory for tpu_custom_call.1']
    #allocation10 [shape = 'u8[65536]{0}', space=vmem, size = 0x10000, scoped, tag = 'input window, operand 5, single buffered']
    #allocation11 [shape = 'u8[8192]{0}', space=vmem, size = 0x2000, scoped, tag = 'output window, operand 0, single buffered']
    %13 = vsyncpa [#allocation3], 0
    %14 = vsyncpa [#allocation6], 0
    %15 = vsyncpa [#allocation9], 0
    %16 = vsyncpa [#allocation4], 0
    // Predicated region
    $region2: #{tpu_custom_call.1} parent=1 // pred_check
      _
    $region3: #{tpu_custom_call.1} parent=1 // pred_check_branch
      %18 = sbr.rel (0) target = $region5
    $region4: #{tpu_custom_call.1} parent=1 // pred_region
      %s20 = ssub.s32 48, 48
      %21 = vsyncadd [#allocation3], %s20
      %s23 = sshll.u32 [#allocation2], 4
      %s24 = int_to_ptr.vmem [resolvable:$true] %s23
      %26 = dma.hbm_to_vmem [thread:$0]  %s0, 48, %s24, [#allocation3]
    $region5: #{tpu_custom_call.1} parent=1 // pred_fallthru
      _
    // Predicated region
    $region6: #{tpu_custom_call.1} parent=1 // pred_check
      _
    $region7: #{tpu_custom_call.1} parent=1 // pred_check_branch
      %28 = sbr.rel (0) target = $region9
    $region8: #{tpu_custom_call.1} parent=1 // pred_region
      _
    $region9: #{tpu_custom_call.1} parent=1 // pred_fallthru
      _
    // Predicated region
    $region10: #{tpu_custom_call.1} parent=1 // pred_check
      _
    $region11: #{tpu_custom_call.1} parent=1 // pred_check_branch
      %30 = sbr.rel (0) target = $region13
    $region12: #{tpu_custom_call.1} parent=1 // pred_region
      %s32 = ssub.s32 768, 768
      %33 = vsyncadd [#allocation6], %s32
      %s34 = sshll.u32 [#allocation5], 4
      %s35 = int_to_ptr.vmem [resolvable:$true] %s34
      %40 = dma.hbm_to_vmem [thread:$0]  %s2, 768, %s35, [#allocation6], 192, 192, 12
    $region13: #{tpu_custom_call.1} parent=1 // pred_fallthru
      _
    // Predicated region
    $region14: #{tpu_custom_call.1} parent=1 // pred_check
      _
    $region15: #{tpu_custom_call.1} parent=1 // pred_check_branch
      %42 = sbr.rel (0) target = $region17
    $region16: #{tpu_custom_call.1} parent=1 // pred_region
      %s44 = ssub.s32 18432, 18432
      %45 = vsyncadd [#allocation6], %s44
      %s46 = sshll.u32 [#allocation7], 4
      %s47 = int_to_ptr.vmem [resolvable:$true] %s46
      %52 = dma.hbm_to_vmem [thread:$0]  %s3, 18432, %s47, [#allocation6], 512, 512, 32
    $region17: #{tpu_custom_call.1} parent=1 // pred_fallthru
      _
    // Predicated region
    $region18: #{tpu_custom_call.1} parent=1 // pred_check
      _
    $region19: #{tpu_custom_call.1} parent=1 // pred_check_branch
      %54 = sbr.rel (0) target = $region21
    $region20: #{tpu_custom_call.1} parent=1 // pred_region
      %s56 = ssub.s32 18432, 18432
      %57 = vsyncadd [#allocation9], %s56
      %s58 = sshll.u32 [#allocation8], 4
      %s59 = int_to_ptr.vmem [resolvable:$true] %s58
      %64 = dma.hbm_to_vmem [thread:$0]  %s4, 18432, %s59, [#allocation9], 512, 512, 32
    $region21: #{tpu_custom_call.1} parent=1 // pred_fallthru
      _
    // Predicated region
    $region22: #{tpu_custom_call.1} parent=1 // pred_check
      _
    $region23: #{tpu_custom_call.1} parent=1 // pred_check_branch
      %66 = sbr.rel (0) target = $region25
    $region24: #{tpu_custom_call.1} parent=1 // pred_region
      %s68 = ssub.s32 2048, 2048
      %69 = vsyncadd [#allocation9], %s68
      %s70 = sshll.u32 [#allocation10], 4
      %s71 = int_to_ptr.vmem [resolvable:$true] %s70
      %76 = dma.hbm_to_vmem [thread:$0]  %s5, 2048, %s71, [#allocation9], 512, 512, 32
    $region25: #{tpu_custom_call.1} parent=1 // pred_fallthru
      _
    // Predicated region
    $region26: #{tpu_custom_call.1} parent=1 // pred_check
      _
    $region27: #{tpu_custom_call.1} parent=1 // pred_check_branch
      %78 = sbr.rel (0) target = $region29
    $region28: #{tpu_custom_call.1} parent=1 // pred_region
      _
    $region29: #{tpu_custom_call.1} parent=1 // pred_fallthru
      _
    // Predicated region
    $region30: #{tpu_custom_call.1} parent=1 // pred_check
      _
    $region31: #{tpu_custom_call.1} parent=1 // pred_check_branch
      %80 = sbr.rel (0) target = $region33
    $region32: #{tpu_custom_call.1} parent=1 // pred_region
      _
    $region33: #{tpu_custom_call.1} parent=1 // pred_fallthru
      _
    // Predicated region
    $region34: #{tpu_custom_call.1} parent=1 // pred_check
      _
    $region35: #{tpu_custom_call.1} parent=1 // pred_check_branch
      %82 = sbr.rel (0) target = $region37
    $region36: #{tpu_custom_call.1} parent=1 // pred_region
      %83 = dma.done [#allocation3], 48
    $region37: #{tpu_custom_call.1} parent=1 // pred_fallthru
      _
    // Predicated region
    $region38: #{tpu_custom_call.1} parent=1 // pred_check
      _
    $region39: #{tpu_custom_call.1} parent=1 // pred_check_branch
      %85 = sbr.rel (0) target = $region41
    $region40: #{tpu_custom_call.1} parent=1 // pred_region
      %86 = dma.done [#allocation6], 768
    $region41: #{tpu_custom_call.1} parent=1 // pred_fallthru
      _
    // Predicated region
    $region42: #{tpu_custom_call.1} parent=1 // pred_check
      _
    $region43: #{tpu_custom_call.1} parent=1 // pred_check_branch
      %88 = sbr.rel (0) target = $region45
    $region44: #{tpu_custom_call.1} parent=1 // pred_region
      %89 = dma.done [#allocation6], 18432
    $region45: #{tpu_custom_call.1} parent=1 // pred_fallthru
      _
    // Predicated region
    $region46: #{tpu_custom_call.1} parent=1 // pred_check
      _
    $region47: #{tpu_custom_call.1} parent=1 // pred_check_branch
      %91 = sbr.rel (0) target = $region49
    $region48: #{tpu_custom_call.1} parent=1 // pred_region
      %92 = dma.done [#allocation9], 18432
    $region49: #{tpu_custom_call.1} parent=1 // pred_fallthru
      _
    // Predicated region
    $region50: #{tpu_custom_call.1} parent=1 // pred_check
      _
    $region51: #{tpu_custom_call.1} parent=1 // pred_check_branch
      %94 = sbr.rel (0) target = $region53
    $region52: #{tpu_custom_call.1} parent=1 // pred_region
      %95 = dma.done [#allocation9], 2048
    $region53: #{tpu_custom_call.1} parent=1 // pred_fallthru
      _
    %v98 = vld [vmem:[#allocation2] sm:$0x7]
    %v99 = vld [vmem:[%s1] sm:$0x1]
    %v100 = vld [vmem:[#allocation5] sm:$0xff]
    %v101 = vld [vmem:[#allocation5 + $0x8] sm:$0xf]
    %v102 = vld [vmem:[#allocation5 + $0xc] sm:$0xff]
    %v103 = vld [vmem:[#allocation5 + $0x14] sm:$0xf]
    %v104 = vld [vmem:[#allocation5 + $0x18] sm:$0xff]
    %v105 = vld [vmem:[#allocation5 + $0x20] sm:$0xf]
    %v106 = vld [vmem:[#allocation5 + $0x24] sm:$0xff]
    %v107 = vld [vmem:[#allocation5 + $0x2c] sm:$0xf]
    %v116 = vunpack.c.l.b16 %v100
    %v117 = vunpack.c.h.b16 %v100
    %v118 = vunpack.c.l.b16 %v101
    %v119 = vunpack.c.l.b16 %v102
    %v120 = vunpack.c.h.b16 %v102
    %v121 = vunpack.c.l.b16 %v103
    %v122 = vunpack.c.l.b16 %v104
    %v123 = vunpack.c.h.b16 %v104
    %v124 = vunpack.c.l.b16 %v105
    %v125 = vunpack.c.l.b16 %v106
    %v126 = vunpack.c.h.b16 %v106
    %v127 = vunpack.c.l.b16 %v107
    %v128 = vpack.c.b16 %v119, %v116
    %v129 = vpack.c.b16 %v120, %v117
    %v130 = vpack.c.b16 %v121, %v118
    %v131 = vpack.c.b16 %v125, %v122
    %v132 = vpack.c.b16 %v126, %v123
    %v133 = vpack.c.b16 %v127, %v124
    %vm140 = vcmask 261120
    %v142 = vsel %vm140, %v99, 0
    %144 = vmatprep.subr.bf16.mxu0 %v129
    %145 = vmatpush1.bf16.msra.mxu0 %v128
    %146 = vmatprep.subr.bf16.mxu0 %v132
    %147 = vmatpush1.bf16.msra.mxu0 %v131
    %148 = vmatprep.subr.bf16.mxu0 0
    %149 = vmatpush1.bf16.msra.mxu0 0
    %150 = vmatprep.subr.bf16.mxu0 0
    %151 = vmatpush1.bf16.msra.mxu0 0
    %152 = vmatprep.subr.bf16.mxu0 0
    %153 = vmatpush1.bf16.msra.mxu0 0
    %154 = vmatprep.subr.bf16.mxu0 0
    %155 = vmatpush1.bf16.msra.mxu0 0
    %156 = vmatprep.subr.bf16.mxu0 0
    %157 = vmatpush1.bf16.msra.mxu0 0
    %158 = vmatprep.subr.bf16.mxu0 0
    %159 = vmatpush1.bf16.msra.mxu0 0
    %160 = vmatprep.subr.bf16.mxu0 0
    %161 = vmatpush1.bf16.msra.mxu0 0
    %162 = vmatprep.subr.bf16.mxu0 0
    %163 = vmatpush1.bf16.msra.mxu0 0
    %164 = vmatprep.subr.bf16.mxu0 0
    %165 = vmatpush1.bf16.msra.mxu0 0
    %166 = vmatprep.subr.bf16.mxu0 0
    %167 = vmatpush1.bf16.msra.mxu0 0
    %168 = vmatprep.subr.bf16.mxu0 0
    %169 = vmatpush1.bf16.msra.mxu0 0
    %170 = vmatprep.subr.bf16.mxu0 0
    %171 = vmatpush1.bf16.msra.mxu0 0
    %172 = vmatprep.subr.bf16.mxu0 0
    %173 = vmatpush1.bf16.msra.mxu0 0
    %174 = vmatprep.subr.bf16.mxu0 0
    %175 = vmatpush1.bf16.msra.mxu0 0
    %176 = vmatprep.mubr.bf16.mxu0 0
    %177 = vmatmul.mubr.bf16.gmra.mrb[0].mxu0 %v142
    %v178 = vpop.f32.mrb[0].mxu0
    %v179 = vadd.f32 0.0, %v178
    %v180 = vpop.f32.mrb[0].mxu0
    %v181 = vadd.f32 0.0, %v180
    %v182 = vpop.f32.mrb[0].mxu0
    %v183 = vpop.f32.mrb[0].mxu0
    %184 = vdwg.mxu0
    %185 = vmatprep.subr.bf16.mxu0 0
    %186 = vmatpush1.bf16.msra.mxu0 %v130
    %187 = vmatprep.subr.bf16.mxu0 0
    %188 = vmatpush1.bf16.msra.mxu0 %v133
    %189 = vmatprep.subr.bf16.mxu0 0
    %190 = vmatpush1.bf16.msra.mxu0 0
    %191 = vmatprep.subr.bf16.mxu0 0
    %192 = vmatpush1.bf16.msra.mxu0 0
    %193 = vmatprep.subr.bf16.mxu0 0
    %194 = vmatpush1.bf16.msra.mxu0 0
    %195 = vmatprep.subr.bf16.mxu0 0
    %196 = vmatpush1.bf16.msra.mxu0 0
    %197 = vmatprep.subr.bf16.mxu0 0
    %198 = vmatpush1.bf16.msra.mxu0 0
    %199 = vmatprep.subr.bf16.mxu0 0
    %200 = vmatpush1.bf16.msra.mxu0 0
    %201 = vmatprep.subr.bf16.mxu0 0
    %202 = vmatpush1.bf16.msra.mxu0 0
    %203 = vmatprep.subr.bf16.mxu0 0
    %204 = vmatpush1.bf16.msra.mxu0 0
    %205 = vmatprep.subr.bf16.mxu0 0
    %206 = vmatpush1.bf16.msra.mxu0 0
    %207 = vmatprep.subr.bf16.mxu0 0
    %208 = vmatpush1.bf16.msra.mxu0 0
    %209 = vmatprep.subr.bf16.mxu0 0
    %210 = vmatpush1.bf16.msra.mxu0 0
    %211 = vmatprep.subr.bf16.mxu0 0
    %212 = vmatpush1.bf16.msra.mxu0 0
    %213 = vmatprep.subr.bf16.mxu0 0
    %214 = vmatpush1.bf16.msra.mxu0 0
    %215 = vmatprep.subr.bf16.mxu0 0
    %216 = vmatpush1.bf16.msra.mxu0 0
    %217 = vmatprep.mubr.bf16.mxu0 0
    %218 = vmatmul.mubr.bf16.gmra.mrb[0].mxu0 %v142
    %v219 = vpop.f32.mrb[0].mxu0
    %v220 = vadd.f32 0.0, %v219
    %v221 = vpop.f32.mrb[0].mxu0
    %v222 = vpop.f32.mrb[0].mxu0
    %v223 = vpop.f32.mrb[0].mxu0
    %224 = vdwg.mxu0
    %vm225 = vcmp.gt.f32.partialorder %v179, 0.5
    %vm226 = vcmp.gt.f32.partialorder %v181, 0.5
    %vm227 = vcmp.gt.f32.partialorder %v220, 0.5
    %v228 = vsel %vm225, 1, 0
    %v229 = vsel %vm226, 1, 0
    %v230 = vsel %vm227, 1, 0
    %v231 = vcombine.low %v228, %v229
    %v233 = vunpack.c.l.s4 1983009808
    %v234 = vunpack.c.0.s8 %v233
    %v235 = vlaneseq
    %v236 = vshrl.u32 %v235, 7
    %v237 = vsub.s32 %v234, %v236
    %v238 = vrot.slane %v231, %v237
    %v240 = vunpack.c.l.s4 1983009808
    %v241 = vunpack.c.0.s8 %v240
    %v242 = vlaneseq
    %v243 = vshrl.u32 %v242, 7
    %v244 = vsub.s32 %v241, %v243
    %v245 = vrot.slane %v230, %v244
    %v246 = vcombine.low %v238, %v245
    %vm247 = vcmp.ne.s32.totalorder %v246, 0
    %v248 = vsel %vm247, 1, 0
    %v249 = vpack.c.b16 %v248, %v248
    %vm250 = vcmp.ne.s16.totalorder %v249, 0
    %v251 = vsel %vm250, %v98, 0
    %v252 = vld [vmem:[#allocation7] sm:$0xff]
    %v253 = vld [vmem:[#allocation7 + $0x8] sm:$0xff]
    %v254 = vld [vmem:[#allocation7 + $0x10] sm:$0xff]
    %v255 = vld [vmem:[#allocation7 + $0x18] sm:$0xff]
    %v256 = vld [vmem:[#allocation7 + $0x20] sm:$0xff]
    %v257 = vld [vmem:[#allocation7 + $0x28] sm:$0xff]
    %v258 = vld [vmem:[#allocation7 + $0x30] sm:$0xff]
    %v259 = vld [vmem:[#allocation7 + $0x38] sm:$0xff]
    %v260 = vld [vmem:[#allocation7 + $0x40] sm:$0xff]
    %v261 = vld [vmem:[#allocation7 + $0x48] sm:$0xff]
    %v262 = vld [vmem:[#allocation7 + $0x50] sm:$0xff]
    %v263 = vld [vmem:[#allocation7 + $0x58] sm:$0xff]
    %v264 = vld [vmem:[#allocation7 + $0x60] sm:$0xff]
    %v265 = vld [vmem:[#allocation7 + $0x68] sm:$0xff]
    %v266 = vld [vmem:[#allocation7 + $0x70] sm:$0xff]
    %v267 = vld [vmem:[#allocation7 + $0x78] sm:$0xff]
    %v268 = vld [vmem:[#allocation7 + $0x80] sm:$0xff]
    %v269 = vld [vmem:[#allocation7 + $0x88] sm:$0xff]
    %v270 = vld [vmem:[#allocation7 + $0x90] sm:$0xff]
    %v271 = vld [vmem:[#allocation7 + $0x98] sm:$0xff]
    %v272 = vld [vmem:[#allocation7 + $0xa0] sm:$0xff]
    %v273 = vld [vmem:[#allocation7 + $0xa8] sm:$0xff]
    %v274 = vld [vmem:[#allocation7 + $0xb0] sm:$0xff]
    %v275 = vld [vmem:[#allocation7 + $0xb8] sm:$0xff]
    %v276 = vld [vmem:[#allocation7 + $0xc0] sm:$0xff]
    %v277 = vld [vmem:[#allocation7 + $0xc8] sm:$0xff]
    %v278 = vld [vmem:[#allocation7 + $0xd0] sm:$0xff]
    %v279 = vld [vmem:[#allocation7 + $0xd8] sm:$0xff]
    %v280 = vld [vmem:[#allocation7 + $0xe0] sm:$0xff]
    %v281 = vld [vmem:[#allocation7 + $0xe8] sm:$0xff]
    %v282 = vld [vmem:[#allocation7 + $0xf0] sm:$0xff]
    %v283 = vld [vmem:[#allocation7 + $0xf8] sm:$0xff]
    %v284 = vld [vmem:[#allocation7 + $0x100] sm:$0xff]
    %v285 = vld [vmem:[#allocation7 + $0x108] sm:$0xff]
    %v286 = vld [vmem:[#allocation7 + $0x110] sm:$0xff]
    %v287 = vld [vmem:[#allocation7 + $0x118] sm:$0xff]
    %v288 = vld [vmem:[#allocation7 + $0x120] sm:$0xff]
    %v289 = vld [vmem:[#allocation7 + $0x128] sm:$0xff]
    %v290 = vld [vmem:[#allocation7 + $0x130] sm:$0xff]
    %v291 = vld [vmem:[#allocation7 + $0x138] sm:$0xff]
    %v292 = vld [vmem:[#allocation7 + $0x140] sm:$0xff]
    %v293 = vld [vmem:[#allocation7 + $0x148] sm:$0xff]
    %v294 = vld [vmem:[#allocation7 + $0x150] sm:$0xff]
    %v295 = vld [vmem:[#allocation7 + $0x158] sm:$0xff]
    %v296 = vld [vmem:[#allocation7 + $0x160] sm:$0xff]
    %v297 = vld [vmem:[#allocation7 + $0x168] sm:$0xff]
    %v298 = vld [vmem:[#allocation7 + $0x170] sm:$0xff]
    %v299 = vld [vmem:[#allocation7 + $0x178] sm:$0xff]
    %v300 = vld [vmem:[#allocation7 + $0x180] sm:$0xff]
    %v301 = vld [vmem:[#allocation7 + $0x188] sm:$0xff]
    %v302 = vld [vmem:[#allocation7 + $0x190] sm:$0xff]
    %v303 = vld [vmem:[#allocation7 + $0x198] sm:$0xff]
    %v304 = vld [vmem:[#allocation7 + $0x1a0] sm:$0xff]
    %v305 = vld [vmem:[#allocation7 + $0x1a8] sm:$0xff]
    %v306 = vld [vmem:[#allocation7 + $0x1b0] sm:$0xff]
    %v307 = vld [vmem:[#allocation7 + $0x1b8] sm:$0xff]
    %v308 = vld [vmem:[#allocation7 + $0x1c0] sm:$0xff]
    %v309 = vld [vmem:[#allocation7 + $0x1c8] sm:$0xff]
    %v310 = vld [vmem:[#allocation7 + $0x1d0] sm:$0xff]
    %v311 = vld [vmem:[#allocation7 + $0x1d8] sm:$0xff]
    %v312 = vld [vmem:[#allocation7 + $0x1e0] sm:$0xff]
    %v313 = vld [vmem:[#allocation7 + $0x1e8] sm:$0xff]
    %v314 = vld [vmem:[#allocation7 + $0x1f0] sm:$0xff]
    %v315 = vld [vmem:[#allocation7 + $0x1f8] sm:$0xff]
    %v316 = vld [vmem:[#allocation7 + $0x200] sm:$0xff]
    %v317 = vld [vmem:[#allocation7 + $0x208] sm:$0xff]
    %v318 = vld [vmem:[#allocation7 + $0x210] sm:$0xff]
    %v319 = vld [vmem:[#allocation7 + $0x218] sm:$0xff]
    %v320 = vld [vmem:[#allocation7 + $0x220] sm:$0xff]
    %v321 = vld [vmem:[#allocation7 + $0x228] sm:$0xff]
    %v322 = vld [vmem:[#allocation7 + $0x230] sm:$0xff]
    %v323 = vld [vmem:[#allocation7 + $0x238] sm:$0xff]
    %v324 = vld [vmem:[#allocation7 + $0x240] sm:$0xff]
    %v325 = vld [vmem:[#allocation7 + $0x248] sm:$0xff]
    %v326 = vld [vmem:[#allocation7 + $0x250] sm:$0xff]
    %v327 = vld [vmem:[#allocation7 + $0x258] sm:$0xff]
    %v328 = vld [vmem:[#allocation7 + $0x260] sm:$0xff]
    %v329 = vld [vmem:[#allocation7 + $0x268] sm:$0xff]
    %v330 = vld [vmem:[#allocation7 + $0x270] sm:$0xff]
    %v331 = vld [vmem:[#allocation7 + $0x278] sm:$0xff]
    %v332 = vld [vmem:[#allocation7 + $0x280] sm:$0xff]
    %v333 = vld [vmem:[#allocation7 + $0x288] sm:$0xff]
    %v334 = vld [vmem:[#allocation7 + $0x290] sm:$0xff]
    %v335 = vld [vmem:[#allocation7 + $0x298] sm:$0xff]
    %v336 = vld [vmem:[#allocation7 + $0x2a0] sm:$0xff]
    %v337 = vld [vmem:[#allocation7 + $0x2a8] sm:$0xff]
    %v338 = vld [vmem:[#allocation7 + $0x2b0] sm:$0xff]
    %v339 = vld [vmem:[#allocation7 + $0x2b8] sm:$0xff]
    %v340 = vld [vmem:[#allocation7 + $0x2c0] sm:$0xff]
    %v341 = vld [vmem:[#allocation7 + $0x2c8] sm:$0xff]
    %v342 = vld [vmem:[#allocation7 + $0x2d0] sm:$0xff]
    %v343 = vld [vmem:[#allocation7 + $0x2d8] sm:$0xff]
    %v344 = vld [vmem:[#allocation7 + $0x2e0] sm:$0xff]
    %v345 = vld [vmem:[#allocation7 + $0x2e8] sm:$0xff]
    %v346 = vld [vmem:[#allocation7 + $0x2f0] sm:$0xff]
    %v347 = vld [vmem:[#allocation7 + $0x2f8] sm:$0xff]
    %v348 = vld [vmem:[#allocation7 + $0x300] sm:$0xff]
    %v349 = vld [vmem:[#allocation7 + $0x308] sm:$0xff]
    %v350 = vld [vmem:[#allocation7 + $0x310] sm:$0xff]
    %v351 = vld [vmem:[#allocation7 + $0x318] sm:$0xff]
    %v352 = vld [vmem:[#allocation7 + $0x320] sm:$0xff]
    %v353 = vld [vmem:[#allocation7 + $0x328] sm:$0xff]
    %v354 = vld [vmem:[#allocation7 + $0x330] sm:$0xff]
    %v355 = vld [vmem:[#allocation7 + $0x338] sm:$0xff]
    %v356 = vld [vmem:[#allocation7 + $0x340] sm:$0xff]
    %v357 = vld [vmem:[#allocation7 + $0x348] sm:$0xff]
    %v358 = vld [vmem:[#allocation7 + $0x350] sm:$0xff]
    %v359 = vld [vmem:[#allocation7 + $0x358] sm:$0xff]
    %v360 = vld [vmem:[#allocation7 + $0x360] sm:$0xff]
    %v361 = vld [vmem:[#allocation7 + $0x368] sm:$0xff]
    %v362 = vld [vmem:[#allocation7 + $0x370] sm:$0xff]
    %v363 = vld [vmem:[#allocation7 + $0x378] sm:$0xff]
    %v364 = vld [vmem:[#allocation7 + $0x380] sm:$0xff]
    %v365 = vld [vmem:[#allocation7 + $0x388] sm:$0xff]
    %v366 = vld [vmem:[#allocation7 + $0x390] sm:$0xff]
    %v367 = vld [vmem:[#allocation7 + $0x398] sm:$0xff]
    %v368 = vld [vmem:[#allocation7 + $0x3a0] sm:$0xff]
    %v369 = vld [vmem:[#allocation7 + $0x3a8] sm:$0xff]
    %v370 = vld [vmem:[#allocation7 + $0x3b0] sm:$0xff]
    %v371 = vld [vmem:[#allocation7 + $0x3b8] sm:$0xff]
    %v372 = vld [vmem:[#allocation7 + $0x3c0] sm:$0xff]
    %v373 = vld [vmem:[#allocation7 + $0x3c8] sm:$0xff]
    %v374 = vld [vmem:[#allocation7 + $0x3d0] sm:$0xff]
    %v375 = vld [vmem:[#allocation7 + $0x3d8] sm:$0xff]
    %v376 = vld [vmem:[#allocation7 + $0x3e0] sm:$0xff]
    %v377 = vld [vmem:[#allocation7 + $0x3e8] sm:$0xff]
    %v378 = vld [vmem:[#allocation7 + $0x3f0] sm:$0xff]
    %v379 = vld [vmem:[#allocation7 + $0x3f8] sm:$0xff]
    %v380 = vld [vmem:[#allocation7 + $0x400] sm:$0xff]
    %v381 = vld [vmem:[#allocation7 + $0x408] sm:$0xff]
    %v382 = vld [vmem:[#allocation7 + $0x410] sm:$0xff]
    %v383 = vld [vmem:[#allocation7 + $0x418] sm:$0xff]
    %v384 = vld [vmem:[#allocation7 + $0x420] sm:$0xff]
    %v385 = vld [vmem:[#allocation7 + $0x428] sm:$0xff]
    %v386 = vld [vmem:[#allocation7 + $0x430] sm:$0xff]
    %v387 = vld [vmem:[#allocation7 + $0x438] sm:$0xff]
    %v388 = vld [vmem:[#allocation7 + $0x440] sm:$0xff]
    %v389 = vld [vmem:[#allocation7 + $0x448] sm:$0xff]
    %v390 = vld [vmem:[#allocation7 + $0x450] sm:$0xff]
    %v391 = vld [vmem:[#allocation7 + $0x458] sm:$0xff]
    %v392 = vld [vmem:[#allocation7 + $0x460] sm:$0xff]
    %v393 = vld [vmem:[#allocation7 + $0x468] sm:$0xff]
    %v394 = vld [vmem:[#allocation7 + $0x470] sm:$0xff]
    %v395 = vld [vmem:[#allocation7 + $0x478] sm:$0xff]
    %v396 = vld [vmem:[%s6] sm:$0xff]
    %v398 = vlaneseq
    %v399 = vshrl.u32 %v398, 7
    %v400 = vsub.s32 0, %v399
    %v401 = vrot.slane %v396, %v400
    %v402 = vlaneseq
    %v403 = vshrl.u32 %v402, 7
    %v404 = vsub.s32 1, %v403
    %v405 = vrot.slane %v396, %v404
    %v406 = vlaneseq
    %v407 = vshrl.u32 %v406, 7
    %v408 = vsub.s32 2, %v407
    %v409 = vrot.slane %v396, %v408
    %v410 = vlaneseq
    %v411 = vshrl.u32 %v410, 7
    %v412 = vsub.s32 3, %v411
    %v413 = vrot.slane %v396, %v412
    %v414 = vlaneseq
    %v415 = vshrl.u32 %v414, 7
    %v416 = vsub.s32 4, %v415
    %v417 = vrot.slane %v396, %v416
    %v418 = vlaneseq
    %v419 = vshrl.u32 %v418, 7
    %v420 = vsub.s32 5, %v419
    %v421 = vrot.slane %v396, %v420
    %v422 = vlaneseq
    %v423 = vshrl.u32 %v422, 7
    %v424 = vsub.s32 6, %v423
    %v425 = vrot.slane %v396, %v424
    %v426 = vlaneseq
    %v427 = vshrl.u32 %v426, 7
    %v428 = vsub.s32 7, %v427
    %v429 = vrot.slane %v396, %v428
    %v440 = vunpack.c.l.s4 1966171168
    %v441 = vunpack.c.0.s8 %v440
    %v442 = vlaneseq
    %v443 = vshrl.u32 %v442, 7
    %v444 = vsub.s32 %v441, %v443
    %v445 = vrot.slane %v251, %v444
    %v446 = vcombine.high %v445, %v445
    %v448 = vunpack.c.l.s4 1966171168
    %v449 = vunpack.c.0.s8 %v448
    %v450 = vlaneseq
    %v451 = vshrl.u32 %v450, 7
    %v452 = vsub.s32 %v449, %v451
    %v453 = vrot.slane %v445, %v452
    %v455 = vunpack.c.l.s4 1966171168
    %v456 = vunpack.c.0.s8 %v455
    %v457 = vlaneseq
    %v458 = vshrl.u32 %v457, 7
    %v459 = vsub.s32 %v456, %v458
    %v460 = vrot.slane %v446, %v459
    %v461 = vcombine.high %v453, %v453
    %v608 = vunpack.c.l.b16 %v252
    %v609 = vunpack.c.h.b16 %v252
    %v610 = vunpack.c.l.b16 %v253
    %v611 = vunpack.c.h.b16 %v253
    %v612 = vunpack.c.l.b16 %v254
    %v613 = vunpack.c.h.b16 %v254
    %v614 = vunpack.c.l.b16 %v255
    %v615 = vunpack.c.h.b16 %v255
    %v616 = vunpack.c.l.b16 %v256
    %v617 = vunpack.c.h.b16 %v256
    %v618 = vunpack.c.l.b16 %v257
    %v619 = vunpack.c.h.b16 %v257
    %v620 = vunpack.c.l.b16 %v258
    %v621 = vunpack.c.h.b16 %v258
    %v622 = vunpack.c.l.b16 %v259
    %v623 = vunpack.c.h.b16 %v259
    %v624 = vunpack.c.l.b16 %v260
    %v625 = vunpack.c.h.b16 %v260
    %v626 = vunpack.c.l.b16 %v261
    %v627 = vunpack.c.h.b16 %v261
    %v628 = vunpack.c.l.b16 %v262
    %v629 = vunpack.c.h.b16 %v262
    %v630 = vunpack.c.l.b16 %v263
    %v631 = vunpack.c.h.b16 %v263
    %v632 = vunpack.c.l.b16 %v264
    %v633 = vunpack.c.h.b16 %v264
    %v634 = vunpack.c.l.b16 %v265
    %v635 = vunpack.c.h.b16 %v265
    %v636 = vunpack.c.l.b16 %v266
    %v637 = vunpack.c.h.b16 %v266
    %v638 = vunpack.c.l.b16 %v267
    %v639 = vunpack.c.h.b16 %v267
    %v640 = vunpack.c.l.b16 %v268
    %v641 = vunpack.c.h.b16 %v268
    %v642 = vunpack.c.l.b16 %v269
    %v643 = vunpack.c.h.b16 %v269
    %v644 = vunpack.c.l.b16 %v270
    %v645 = vunpack.c.h.b16 %v270
    %v646 = vunpack.c.l.b16 %v271
    %v647 = vunpack.c.h.b16 %v271
    %v648 = vunpack.c.l.b16 %v272
    %v649 = vunpack.c.h.b16 %v272
    %v650 = vunpack.c.l.b16 %v273
    %v651 = vunpack.c.h.b16 %v273
    %v652 = vunpack.c.l.b16 %v274
    %v653 = vunpack.c.h.b16 %v274
    %v654 = vunpack.c.l.b16 %v275
    %v655 = vunpack.c.h.b16 %v275
    %v656 = vunpack.c.l.b16 %v276
    %v657 = vunpack.c.h.b16 %v276
    %v658 = vunpack.c.l.b16 %v277
    %v659 = vunpack.c.h.b16 %v277
    %v660 = vunpack.c.l.b16 %v278
    %v661 = vunpack.c.h.b16 %v278
    %v662 = vunpack.c.l.b16 %v279
    %v663 = vunpack.c.h.b16 %v279
    %v664 = vunpack.c.l.b16 %v280
    %v665 = vunpack.c.h.b16 %v280
    %v666 = vunpack.c.l.b16 %v281
    %v667 = vunpack.c.h.b16 %v281
    %v668 = vunpack.c.l.b16 %v282
    %v669 = vunpack.c.h.b16 %v282
    %v670 = vunpack.c.l.b16 %v283
    %v671 = vunpack.c.h.b16 %v283
    %v672 = vunpack.c.l.b16 %v284
    %v673 = vunpack.c.h.b16 %v284
    %v674 = vunpack.c.l.b16 %v285
    %v675 = vunpack.c.h.b16 %v285
    %v676 = vunpack.c.l.b16 %v286
    %v677 = vunpack.c.h.b16 %v286
    %v678 = vunpack.c.l.b16 %v287
    %v679 = vunpack.c.h.b16 %v287
    %v680 = vunpack.c.l.b16 %v288
    %v681 = vunpack.c.h.b16 %v288
    %v682 = vunpack.c.l.b16 %v289
    %v683 = vunpack.c.h.b16 %v289
    %v684 = vunpack.c.l.b16 %v290
    %v685 = vunpack.c.h.b16 %v290
    %v686 = vunpack.c.l.b16 %v291
    %v687 = vunpack.c.h.b16 %v291
    %v688 = vunpack.c.l.b16 %v292
    %v689 = vunpack.c.h.b16 %v292
    %v690 = vunpack.c.l.b16 %v293
    %v691 = vunpack.c.h.b16 %v293
    %v692 = vunpack.c.l.b16 %v294
    %v693 = vunpack.c.h.b16 %v294
    %v694 = vunpack.c.l.b16 %v295
    %v695 = vunpack.c.h.b16 %v295
    %v696 = vunpack.c.l.b16 %v296
    %v697 = vunpack.c.h.b16 %v296
    %v698 = vunpack.c.l.b16 %v297
    %v699 = vunpack.c.h.b16 %v297
    %v700 = vunpack.c.l.b16 %v298
    %v701 = vunpack.c.h.b16 %v298
    %v702 = vunpack.c.l.b16 %v299
    %v703 = vunpack.c.h.b16 %v299
    %v704 = vunpack.c.l.b16 %v300
    %v705 = vunpack.c.h.b16 %v300
    %v706 = vunpack.c.l.b16 %v301
    %v707 = vunpack.c.h.b16 %v301
    %v708 = vunpack.c.l.b16 %v302
    %v709 = vunpack.c.h.b16 %v302
    %v710 = vunpack.c.l.b16 %v303
    %v711 = vunpack.c.h.b16 %v303
    %v712 = vunpack.c.l.b16 %v304
    %v713 = vunpack.c.h.b16 %v304
    %v714 = vunpack.c.l.b16 %v305
    %v715 = vunpack.c.h.b16 %v305
    %v716 = vunpack.c.l.b16 %v306
    %v717 = vunpack.c.h.b16 %v306
    %v718 = vunpack.c.l.b16 %v307
    %v719 = vunpack.c.h.b16 %v307
    %v720 = vunpack.c.l.b16 %v308
    %v721 = vunpack.c.h.b16 %v308
    %v722 = vunpack.c.l.b16 %v309
    %v723 = vunpack.c.h.b16 %v309
    %v724 = vunpack.c.l.b16 %v310
    %v725 = vunpack.c.h.b16 %v310
    %v726 = vunpack.c.l.b16 %v311
    %v727 = vunpack.c.h.b16 %v311
    %v728 = vunpack.c.l.b16 %v312
    %v729 = vunpack.c.h.b16 %v312
    %v730 = vunpack.c.l.b16 %v313
    %v731 = vunpack.c.h.b16 %v313
    %v732 = vunpack.c.l.b16 %v314
    %v733 = vunpack.c.h.b16 %v314
    %v734 = vunpack.c.l.b16 %v315
    %v735 = vunpack.c.h.b16 %v315
    %v736 = vunpack.c.l.b16 %v316
    %v737 = vunpack.c.h.b16 %v316
    %v738 = vunpack.c.l.b16 %v317
    %v739 = vunpack.c.h.b16 %v317
    %v740 = vunpack.c.l.b16 %v318
    %v741 = vunpack.c.h.b16 %v318
    %v742 = vunpack.c.l.b16 %v319
    %v743 = vunpack.c.h.b16 %v319
    %v744 = vunpack.c.l.b16 %v320
    %v745 = vunpack.c.h.b16 %v320
    %v746 = vunpack.c.l.b16 %v321
    %v747 = vunpack.c.h.b16 %v321
    %v748 = vunpack.c.l.b16 %v322
    %v749 = vunpack.c.h.b16 %v322
    %v750 = vunpack.c.l.b16 %v323
    %v751 = vunpack.c.h.b16 %v323
    %v752 = vunpack.c.l.b16 %v324
    %v753 = vunpack.c.h.b16 %v324
    %v754 = vunpack.c.l.b16 %v325
    %v755 = vunpack.c.h.b16 %v325
    %v756 = vunpack.c.l.b16 %v326
    %v757 = vunpack.c.h.b16 %v326
    %v758 = vunpack.c.l.b16 %v327
    %v759 = vunpack.c.h.b16 %v327
    %v760 = vunpack.c.l.b16 %v328
    %v761 = vunpack.c.h.b16 %v328
    %v762 = vunpack.c.l.b16 %v329
    %v763 = vunpack.c.h.b16 %v329
    %v764 = vunpack.c.l.b16 %v330
    %v765 = vunpack.c.h.b16 %v330
    %v766 = vunpack.c.l.b16 %v331
    %v767 = vunpack.c.h.b16 %v331
    %v768 = vunpack.c.l.b16 %v332
    %v769 = vunpack.c.h.b16 %v332
    %v770 = vunpack.c.l.b16 %v333
    %v771 = vunpack.c.h.b16 %v333
    %v772 = vunpack.c.l.b16 %v334
    %v773 = vunpack.c.h.b16 %v334
    %v774 = vunpack.c.l.b16 %v335
    %v775 = vunpack.c.h.b16 %v335
    %v776 = vunpack.c.l.b16 %v336
    %v777 = vunpack.c.h.b16 %v336
    %v778 = vunpack.c.l.b16 %v337
    %v779 = vunpack.c.h.b16 %v337
    %v780 = vunpack.c.l.b16 %v338
    %v781 = vunpack.c.h.b16 %v338
    %v782 = vunpack.c.l.b16 %v339
    %v783 = vunpack.c.h.b16 %v339
    %v784 = vunpack.c.l.b16 %v340
    %v785 = vunpack.c.h.b16 %v340
    %v786 = vunpack.c.l.b16 %v341
    %v787 = vunpack.c.h.b16 %v341
    %v788 = vunpack.c.l.b16 %v342
    %v789 = vunpack.c.h.b16 %v342
    %v790 = vunpack.c.l.b16 %v343
    %v791 = vunpack.c.h.b16 %v343
    %v792 = vunpack.c.l.b16 %v344
    %v793 = vunpack.c.h.b16 %v344
    %v794 = vunpack.c.l.b16 %v345
    %v795 = vunpack.c.h.b16 %v345
    %v796 = vunpack.c.l.b16 %v346
    %v797 = vunpack.c.h.b16 %v346
    %v798 = vunpack.c.l.b16 %v347
    %v799 = vunpack.c.h.b16 %v347
    %v800 = vunpack.c.l.b16 %v348
    %v801 = vunpack.c.h.b16 %v348
    %v802 = vunpack.c.l.b16 %v349
    %v803 = vunpack.c.h.b16 %v349
    %v804 = vunpack.c.l.b16 %v350
    %v805 = vunpack.c.h.b16 %v350
    %v806 = vunpack.c.l.b16 %v351
    %v807 = vunpack.c.h.b16 %v351
    %v808 = vunpack.c.l.b16 %v352
    %v809 = vunpack.c.h.b16 %v352
    %v810 = vunpack.c.l.b16 %v353
    %v811 = vunpack.c.h.b16 %v353
    %v812 = vunpack.c.l.b16 %v354
    %v813 = vunpack.c.h.b16 %v354
    %v814 = vunpack.c.l.b16 %v355
    %v815 = vunpack.c.h.b16 %v355
    %v816 = vunpack.c.l.b16 %v356
    %v817 = vunpack.c.h.b16 %v356
    %v818 = vunpack.c.l.b16 %v357
    %v819 = vunpack.c.h.b16 %v357
    %v820 = vunpack.c.l.b16 %v358
    %v821 = vunpack.c.h.b16 %v358
    %v822 = vunpack.c.l.b16 %v359
    %v823 = vunpack.c.h.b16 %v359
    %v824 = vunpack.c.l.b16 %v360
    %v825 = vunpack.c.h.b16 %v360
    %v826 = vunpack.c.l.b16 %v361
    %v827 = vunpack.c.h.b16 %v361
    %v828 = vunpack.c.l.b16 %v362
    %v829 = vunpack.c.h.b16 %v362
    %v830 = vunpack.c.l.b16 %v363
    %v831 = vunpack.c.h.b16 %v363
    %v832 = vunpack.c.l.b16 %v364
    %v833 = vunpack.c.h.b16 %v364
    %v834 = vunpack.c.l.b16 %v365
    %v835 = vunpack.c.h.b16 %v365
    %v836 = vunpack.c.l.b16 %v366
    %v837 = vunpack.c.h.b16 %v366
    %v838 = vunpack.c.l.b16 %v367
    %v839 = vunpack.c.h.b16 %v367
    %v840 = vunpack.c.l.b16 %v368
    %v841 = vunpack.c.h.b16 %v368
    %v842 = vunpack.c.l.b16 %v369
    %v843 = vunpack.c.h.b16 %v369
    %v844 = vunpack.c.l.b16 %v370
    %v845 = vunpack.c.h.b16 %v370
    %v846 = vunpack.c.l.b16 %v371
    %v847 = vunpack.c.h.b16 %v371
    %v848 = vunpack.c.l.b16 %v372
    %v849 = vunpack.c.h.b16 %v372
    %v850 = vunpack.c.l.b16 %v373
    %v851 = vunpack.c.h.b16 %v373
    %v852 = vunpack.c.l.b16 %v374
    %v853 = vunpack.c.h.b16 %v374
    %v854 = vunpack.c.l.b16 %v375
    %v855 = vunpack.c.h.b16 %v375
    %v856 = vunpack.c.l.b16 %v376
    %v857 = vunpack.c.h.b16 %v376
    %v858 = vunpack.c.l.b16 %v377
    %v859 = vunpack.c.h.b16 %v377
    %v860 = vunpack.c.l.b16 %v378
    %v861 = vunpack.c.h.b16 %v378
    %v862 = vunpack.c.l.b16 %v379
    %v863 = vunpack.c.h.b16 %v379
    %v864 = vunpack.c.l.b16 %v380
    %v865 = vunpack.c.h.b16 %v380
    %v866 = vunpack.c.l.b16 %v381
    %v867 = vunpack.c.h.b16 %v381
    %v868 = vunpack.c.l.b16 %v382
    %v869 = vunpack.c.h.b16 %v382
    %v870 = vunpack.c.l.b16 %v383
    %v871 = vunpack.c.h.b16 %v383
    %v872 = vunpack.c.l.b16 %v384
    %v873 = vunpack.c.h.b16 %v384
    %v874 = vunpack.c.l.b16 %v385
    %v875 = vunpack.c.h.b16 %v385
    %v876 = vunpack.c.l.b16 %v386
    %v877 = vunpack.c.h.b16 %v386
    %v878 = vunpack.c.l.b16 %v387
    %v879 = vunpack.c.h.b16 %v387
    %v880 = vunpack.c.l.b16 %v388
    %v881 = vunpack.c.h.b16 %v388
    %v882 = vunpack.c.l.b16 %v389
    %v883 = vunpack.c.h.b16 %v389
    %v884 = vunpack.c.l.b16 %v390
    %v885 = vunpack.c.h.b16 %v390
    %v886 = vunpack.c.l.b16 %v391
    %v887 = vunpack.c.h.b16 %v391
    %v888 = vunpack.c.l.b16 %v392
    %v889 = vunpack.c.h.b16 %v392
    %v890 = vunpack.c.l.b16 %v393
    %v891 = vunpack.c.h.b16 %v393
    %v892 = vunpack.c.l.b16 %v394
    %v893 = vunpack.c.h.b16 %v394
    %v894 = vunpack.c.l.b16 %v395
    %v895 = vunpack.c.h.b16 %v395
    %v896 = vpack.c.b16 %v616, %v608
    %v897 = vpack.c.b16 %v617, %v609
    %v898 = vpack.c.b16 %v618, %v610
    %v899 = vpack.c.b16 %v619, %v611
    %v900 = vpack.c.b16 %v620, %v612
    %v901 = vpack.c.b16 %v621, %v613
    %v902 = vpack.c.b16 %v622, %v614
    %v903 = vpack.c.b16 %v623, %v615
    %v904 = vpack.c.b16 %v632, %v624
    %v905 = vpack.c.b16 %v633, %v625
    %v906 = vpack.c.b16 %v634, %v626
    %v907 = vpack.c.b16 %v635, %v627
    %v908 = vpack.c.b16 %v636, %v628
    %v909 = vpack.c.b16 %v637, %v629
    %v910 = vpack.c.b16 %v638, %v630
    %v911 = vpack.c.b16 %v639, %v631
    %v912 = vpack.c.b16 %v648, %v640
    %v913 = vpack.c.b16 %v649, %v641
    %v914 = vpack.c.b16 %v650, %v642
    %v915 = vpack.c.b16 %v651, %v643
    %v916 = vpack.c.b16 %v652, %v644
    %v917 = vpack.c.b16 %v653, %v645
    %v918 = vpack.c.b16 %v654, %v646
    %v919 = vpack.c.b16 %v655, %v647
    %v920 = vpack.c.b16 %v664, %v656
    %v921 = vpack.c.b16 %v665, %v657
    %v922 = vpack.c.b16 %v666, %v658
    %v923 = vpack.c.b16 %v667, %v659
    %v924 = vpack.c.b16 %v668, %v660
    %v925 = vpack.c.b16 %v669, %v661
    %v926 = vpack.c.b16 %v670, %v662
    %v927 = vpack.c.b16 %v671, %v663
    %v928 = vpack.c.b16 %v680, %v672
    %v929 = vpack.c.b16 %v681, %v673
    %v930 = vpack.c.b16 %v682, %v674
    %v931 = vpack.c.b16 %v683, %v675
    %v932 = vpack.c.b16 %v684, %v676
    %v933 = vpack.c.b16 %v685, %v677
    %v934 = vpack.c.b16 %v686, %v678
    %v935 = vpack.c.b16 %v687, %v679
    %v936 = vpack.c.b16 %v696, %v688
    %v937 = vpack.c.b16 %v697, %v689
    %v938 = vpack.c.b16 %v698, %v690
    %v939 = vpack.c.b16 %v699, %v691
    %v940 = vpack.c.b16 %v700, %v692
    %v941 = vpack.c.b16 %v701, %v693
    %v942 = vpack.c.b16 %v702, %v694
    %v943 = vpack.c.b16 %v703, %v695
    %v944 = vpack.c.b16 %v712, %v704
    %v945 = vpack.c.b16 %v713, %v705
    %v946 = vpack.c.b16 %v714, %v706
    %v947 = vpack.c.b16 %v715, %v707
    %v948 = vpack.c.b16 %v716, %v708
    %v949 = vpack.c.b16 %v717, %v709
    %v950 = vpack.c.b16 %v718, %v710
    %v951 = vpack.c.b16 %v719, %v711
    %v952 = vpack.c.b16 %v728, %v720
    %v953 = vpack.c.b16 %v729, %v721
    %v954 = vpack.c.b16 %v730, %v722
    %v955 = vpack.c.b16 %v731, %v723
    %v956 = vpack.c.b16 %v732, %v724
    %v957 = vpack.c.b16 %v733, %v725
    %v958 = vpack.c.b16 %v734, %v726
    %v959 = vpack.c.b16 %v735, %v727
    %v960 = vpack.c.b16 %v744, %v736
    %v961 = vpack.c.b16 %v745, %v737
    %v962 = vpack.c.b16 %v746, %v738
    %v963 = vpack.c.b16 %v747, %v739
    %v964 = vpack.c.b16 %v748, %v740
    %v965 = vpack.c.b16 %v749, %v741
    %v966 = vpack.c.b16 %v750, %v742
    %v967 = vpack.c.b16 %v751, %v743
    %v968 = vpack.c.b16 %v760, %v752
    %v969 = vpack.c.b16 %v761, %v753
    %v970 = vpack.c.b16 %v762, %v754
    %v971 = vpack.c.b16 %v763, %v755
    %v972 = vpack.c.b16 %v764, %v756
    %v973 = vpack.c.b16 %v765, %v757
    %v974 = vpack.c.b16 %v766, %v758
    %v975 = vpack.c.b16 %v767, %v759
    %v976 = vpack.c.b16 %v776, %v768
    %v977 = vpack.c.b16 %v777, %v769
    %v978 = vpack.c.b16 %v778, %v770
    %v979 = vpack.c.b16 %v779, %v771
    %v980 = vpack.c.b16 %v780, %v772
    %v981 = vpack.c.b16 %v781, %v773
    %v982 = vpack.c.b16 %v782, %v774
    %v983 = vpack.c.b16 %v783, %v775
    %v984 = vpack.c.b16 %v792, %v784
    %v985 = vpack.c.b16 %v793, %v785
    %v986 = vpack.c.b16 %v794, %v786
    %v987 = vpack.c.b16 %v795, %v787
    %v988 = vpack.c.b16 %v796, %v788
    %v989 = vpack.c.b16 %v797, %v789
    %v990 = vpack.c.b16 %v798, %v790
    %v991 = vpack.c.b16 %v799, %v791
    %v992 = vpack.c.b16 %v808, %v800
    %v993 = vpack.c.b16 %v809, %v801
    %v994 = vpack.c.b16 %v810, %v802
    %v995 = vpack.c.b16 %v811, %v803
    %v996 = vpack.c.b16 %v812, %v804
    %v997 = vpack.c.b16 %v813, %v805
    %v998 = vpack.c.b16 %v814, %v806
    %v999 = vpack.c.b16 %v815, %v807
    %v1000 = vpack.c.b16 %v824, %v816
    %v1001 = vpack.c.b16 %v825, %v817
    %v1002 = vpack.c.b16 %v826, %v818
    %v1003 = vpack.c.b16 %v827, %v819
    %v1004 = vpack.c.b16 %v828, %v820
    %v1005 = vpack.c.b16 %v829, %v821
    %v1006 = vpack.c.b16 %v830, %v822
    %v1007 = vpack.c.b16 %v831, %v823
    %v1008 = vpack.c.b16 %v840, %v832
    %v1009 = vpack.c.b16 %v841, %v833
    %v1010 = vpack.c.b16 %v842, %v834
    %v1011 = vpack.c.b16 %v843, %v835
    %v1012 = vpack.c.b16 %v844, %v836
    %v1013 = vpack.c.b16 %v845, %v837
    %v1014 = vpack.c.b16 %v846, %v838
    %v1015 = vpack.c.b16 %v847, %v839
    %v1016 = vpack.c.b16 %v856, %v848
    %v1017 = vpack.c.b16 %v857, %v849
    %v1018 = vpack.c.b16 %v858, %v850
    %v1019 = vpack.c.b16 %v859, %v851
    %v1020 = vpack.c.b16 %v860, %v852
    %v1021 = vpack.c.b16 %v861, %v853
    %v1022 = vpack.c.b16 %v862, %v854
    %v1023 = vpack.c.b16 %v863, %v855
    %v1024 = vpack.c.b16 %v872, %v864
    %v1025 = vpack.c.b16 %v873, %v865
    %v1026 = vpack.c.b16 %v874, %v866
    %v1027 = vpack.c.b16 %v875, %v867
    %v1028 = vpack.c.b16 %v876, %v868
    %v1029 = vpack.c.b16 %v877, %v869
    %v1030 = vpack.c.b16 %v878, %v870
    %v1031 = vpack.c.b16 %v879, %v871
    %v1032 = vpack.c.b16 %v888, %v880
    %v1033 = vpack.c.b16 %v889, %v881
    %v1034 = vpack.c.b16 %v890, %v882
    %v1035 = vpack.c.b16 %v891, %v883
    %v1036 = vpack.c.b16 %v892, %v884
    %v1037 = vpack.c.b16 %v893, %v885
    %v1038 = vpack.c.b16 %v894, %v886
    %v1039 = vpack.c.b16 %v895, %v887
    %v1185 = vsel %vm140, %v461, 0
    %1187 = vmatprep.subr.bf16.mxu0 %v897
    %1188 = vmatpush1.bf16.msra.mxu0 %v896
    %1189 = vmatprep.subr.bf16.mxu0 %v905
    %1190 = vmatpush1.bf16.msra.mxu0 %v904
    %1191 = vmatprep.subr.bf16.mxu0 %v913
    %1192 = vmatpush1.bf16.msra.mxu0 %v912
    %1193 = vmatprep.subr.bf16.mxu0 %v921
    %1194 = vmatpush1.bf16.msra.mxu0 %v920
    %1195 = vmatprep.subr.bf16.mxu0 %v929
    %1196 = vmatpush1.bf16.msra.mxu0 %v928
    %1197 = vmatprep.subr.bf16.mxu0 %v937
    %1198 = vmatpush1.bf16.msra.mxu0 %v936
    %1199 = vmatprep.subr.bf16.mxu0 %v945
    %1200 = vmatpush1.bf16.msra.mxu0 %v944
    %1201 = vmatprep.subr.bf16.mxu0 %v953
    %1202 = vmatpush1.bf16.msra.mxu0 %v952
    %1203 = vmatprep.subr.bf16.mxu0 %v961
    %1204 = vmatpush1.bf16.msra.mxu0 %v960
    %1205 = vmatprep.subr.bf16.mxu0 %v969
    %1206 = vmatpush1.bf16.msra.mxu0 %v968
    %1207 = vmatprep.subr.bf16.mxu0 %v977
    %1208 = vmatpush1.bf16.msra.mxu0 %v976
    %1209 = vmatprep.subr.bf16.mxu0 %v985
    %1210 = vmatpush1.bf16.msra.mxu0 %v984
    %1211 = vmatprep.subr.bf16.mxu0 %v993
    %1212 = vmatpush1.bf16.msra.mxu0 %v992
    %1213 = vmatprep.subr.bf16.mxu0 %v1001
    %1214 = vmatpush1.bf16.msra.mxu0 %v1000
    %1215 = vmatprep.subr.bf16.mxu0 %v1009
    %1216 = vmatpush1.bf16.msra.mxu0 %v1008
    %1217 = vmatprep.subr.bf16.mxu0 %v1017
    %1218 = vmatpush1.bf16.msra.mxu0 %v1016
    %1219 = vmatprep.mubr.bf16.mxu0 %v460
    %1220 = vmatmul.mubr.bf16.gmra.mrb[0].mxu0 %v453
    %v1221 = vpop.f32.mrb[0].mxu0
    %v1222 = vadd.f32 %v401, %v1221
    %v1223 = vpop.f32.mrb[0].mxu0
    %v1224 = vadd.f32 %v405, %v1223
    %v1225 = vpop.f32.mrb[0].mxu0
    %v1226 = vpop.f32.mrb[0].mxu0
    %1227 = vdwg.mxu0
    %1228 = vmatprep.subr.bf16.mxu0 %v1025
    %1229 = vmatpush1.bf16.msra.mxu0 %v1024
    %1230 = vmatprep.subr.bf16.mxu0 %v1033
    %1231 = vmatpush1.bf16.msra.mxu0 %v1032
    %1232 = vmatprep.subr.bf16.mxu0 0
    %1233 = vmatpush1.bf16.msra.mxu0 0
    %1234 = vmatprep.subr.bf16.mxu0 0
    %1235 = vmatpush1.bf16.msra.mxu0 0
    %1236 = vmatprep.subr.bf16.mxu0 0
    %1237 = vmatpush1.bf16.msra.mxu0 0
    %1238 = vmatprep.subr.bf16.mxu0 0
    %1239 = vmatpush1.bf16.msra.mxu0 0
    %1240 = vmatprep.subr.bf16.mxu0 0
    %1241 = vmatpush1.bf16.msra.mxu0 0
    %1242 = vmatprep.subr.bf16.mxu0 0
    %1243 = vmatpush1.bf16.msra.mxu0 0
    %1244 = vmatprep.subr.bf16.mxu0 0
    %1245 = vmatpush1.bf16.msra.mxu0 0
    %1246 = vmatprep.subr.bf16.mxu0 0
    %1247 = vmatpush1.bf16.msra.mxu0 0
    %1248 = vmatprep.subr.bf16.mxu0 0
    %1249 = vmatpush1.bf16.msra.mxu0 0
    %1250 = vmatprep.subr.bf16.mxu0 0
    %1251 = vmatpush1.bf16.msra.mxu0 0
    %1252 = vmatprep.subr.bf16.mxu0 0
    %1253 = vmatpush1.bf16.msra.mxu0 0
    %1254 = vmatprep.subr.bf16.mxu0 0
    %1255 = vmatpush1.bf16.msra.mxu0 0
    %1256 = vmatprep.subr.bf16.mxu0 0
    %1257 = vmatpush1.bf16.msra.mxu0 0
    %1258 = vmatprep.subr.bf16.mxu0 0
    %1259 = vmatpush1.bf16.msra.mxu0 0
    %1260 = vmatprep.mubr.bf16.mxu0 0
    %1261 = vmatmul.mubr.bf16.gmra.mrb[0].mxu0 %v1185
    %v1262 = vpop.f32.mrb[0].mxu0
    %v1263 = vadd.f32 %v1222, %v1262
    %v1264 = vpop.f32.mrb[0].mxu0
    %v1265 = vadd.f32 %v1224, %v1264
    %v1266 = vpop.f32.mrb[0].mxu0
    %v1267 = vpop.f32.mrb[0].mxu0
    %1268 = vdwg.mxu0
    %1269 = vmatprep.subr.bf16.mxu0 %v899
    %1270 = vmatpush1.bf16.msra.mxu0 %v898
    %1271 = vmatprep.subr.bf16.mxu0 %v907
    %1272 = vmatpush1.bf16.msra.mxu0 %v906
    %1273 = vmatprep.subr.bf16.mxu0 %v915
    %1274 = vmatpush1.bf16.msra.mxu0 %v914
    %1275 = vmatprep.subr.bf16.mxu0 %v923
    %1276 = vmatpush1.bf16.msra.mxu0 %v922
    %1277 = vmatprep.subr.bf16.mxu0 %v931
    %1278 = vmatpush1.bf16.msra.mxu0 %v930
    %1279 = vmatprep.subr.bf16.mxu0 %v939
    %1280 = vmatpush1.bf16.msra.mxu0 %v938
    %1281 = vmatprep.subr.bf16.mxu0 %v947
    %1282 = vmatpush1.bf16.msra.mxu0 %v946
    %1283 = vmatprep.subr.bf16.mxu0 %v955
    %1284 = vmatpush1.bf16.msra.mxu0 %v954
    %1285 = vmatprep.subr.bf16.mxu0 %v963
    %1286 = vmatpush1.bf16.msra.mxu0 %v962
    %1287 = vmatprep.subr.bf16.mxu0 %v971
    %1288 = vmatpush1.bf16.msra.mxu0 %v970
    %1289 = vmatprep.subr.bf16.mxu0 %v979
    %1290 = vmatpush1.bf16.msra.mxu0 %v978
    %1291 = vmatprep.subr.bf16.mxu0 %v987
    %1292 = vmatpush1.bf16.msra.mxu0 %v986
    %1293 = vmatprep.subr.bf16.mxu0 %v995
    %1294 = vmatpush1.bf16.msra.mxu0 %v994
    %1295 = vmatprep.subr.bf16.mxu0 %v1003
    %1296 = vmatpush1.bf16.msra.mxu0 %v1002
    %1297 = vmatprep.subr.bf16.mxu0 %v1011
    %1298 = vmatpush1.bf16.msra.mxu0 %v1010
    %1299 = vmatprep.subr.bf16.mxu0 %v1019
    %1300 = vmatpush1.bf16.msra.mxu0 %v1018
    %1301 = vmatprep.mubr.bf16.mxu0 %v460
    %1302 = vmatmul.mubr.bf16.gmra.mrb[0].mxu0 %v453
    %v1303 = vpop.f32.mrb[0].mxu0
    %v1304 = vadd.f32 %v409, %v1303
    %v1305 = vpop.f32.mrb[0].mxu0
    %v1306 = vadd.f32 %v413, %v1305
    %v1307 = vpop.f32.mrb[0].mxu0
    %v1308 = vpop.f32.mrb[0].mxu0
    %1309 = vdwg.mxu0
    %1310 = vmatprep.subr.bf16.mxu0 %v1027
    %1311 = vmatpush1.bf16.msra.mxu0 %v1026
    %1312 = vmatprep.subr.bf16.mxu0 %v1035
    %1313 = vmatpush1.bf16.msra.mxu0 %v1034
    %1314 = vmatprep.subr.bf16.mxu0 0
    %1315 = vmatpush1.bf16.msra.mxu0 0
    %1316 = vmatprep.subr.bf16.mxu0 0
    %1317 = vmatpush1.bf16.msra.mxu0 0
    %1318 = vmatprep.subr.bf16.mxu0 0
    %1319 = vmatpush1.bf16.msra.mxu0 0
    %1320 = vmatprep.subr.bf16.mxu0 0
    %1321 = vmatpush1.bf16.msra.mxu0 0
    %1322 = vmatprep.subr.bf16.mxu0 0
    %1323 = vmatpush1.bf16.msra.mxu0 0
    %1324 = vmatprep.subr.bf16.mxu0 0
    %1325 = vmatpush1.bf16.msra.mxu0 0
    %1326 = vmatprep.subr.bf16.mxu0 0
    %1327 = vmatpush1.bf16.msra.mxu0 0
    %1328 = vmatprep.subr.bf16.mxu0 0
    %1329 = vmatpush1.bf16.msra.mxu0 0
    %1330 = vmatprep.subr.bf16.mxu0 0
    %1331 = vmatpush1.bf16.msra.mxu0 0
    %1332 = vmatprep.subr.bf16.mxu0 0
    %1333 = vmatpush1.bf16.msra.mxu0 0
    %1334 = vmatprep.subr.bf16.mxu0 0
    %1335 = vmatpush1.bf16.msra.mxu0 0
    %1336 = vmatprep.subr.bf16.mxu0 0
    %1337 = vmatpush1.bf16.msra.mxu0 0
    %1338 = vmatprep.subr.bf16.mxu0 0
    %1339 = vmatpush1.bf16.msra.mxu0 0
    %1340 = vmatprep.subr.bf16.mxu0 0
    %1341 = vmatpush1.bf16.msra.mxu0 0
    %1342 = vmatprep.mubr.bf16.mxu0 0
    %1343 = vmatmul.mubr.bf16.gmra.mrb[0].mxu0 %v1185
    %v1344 = vpop.f32.mrb[0].mxu0
    %v1345 = vadd.f32 %v1304, %v1344
    %v1346 = vpop.f32.mrb[0].mxu0
    %v1347 = vadd.f32 %v1306, %v1346
    %v1348 = vpop.f32.mrb[0].mxu0
    %v1349 = vpop.f32.mrb[0].mxu0
    %1350 = vdwg.mxu0
    %1351 = vmatprep.subr.bf16.mxu0 %v901
    %1352 = vmatpush1.bf16.msra.mxu0 %v900
    %1353 = vmatprep.subr.bf16.mxu0 %v909
    %1354 = vmatpush1.bf16.msra.mxu0 %v908
    %1355 = vmatprep.subr.bf16.mxu0 %v917
    %1356 = vmatpush1.bf16.msra.mxu0 %v916
    %1357 = vmatprep.subr.bf16.mxu0 %v925
    %1358 = vmatpush1.bf16.msra.mxu0 %v924
    %1359 = vmatprep.subr.bf16.mxu0 %v933
    %1360 = vmatpush1.bf16.msra.mxu0 %v932
    %1361 = vmatprep.subr.bf16.mxu0 %v941
    %1362 = vmatpush1.bf16.msra.mxu0 %v940
    %1363 = vmatprep.subr.bf16.mxu0 %v949
    %1364 = vmatpush1.bf16.msra.mxu0 %v948
    %1365 = vmatprep.subr.bf16.mxu0 %v957
    %1366 = vmatpush1.bf16.msra.mxu0 %v956
    %1367 = vmatprep.subr.bf16.mxu0 %v965
    %1368 = vmatpush1.bf16.msra.mxu0 %v964
    %1369 = vmatprep.subr.bf16.mxu0 %v973
    %1370 = vmatpush1.bf16.msra.mxu0 %v972
    %1371 = vmatprep.subr.bf16.mxu0 %v981
    %1372 = vmatpush1.bf16.msra.mxu0 %v980
    %1373 = vmatprep.subr.bf16.mxu0 %v989
    %1374 = vmatpush1.bf16.msra.mxu0 %v988
    %1375 = vmatprep.subr.bf16.mxu0 %v997
    %1376 = vmatpush1.bf16.msra.mxu0 %v996
    %1377 = vmatprep.subr.bf16.mxu0 %v1005
    %1378 = vmatpush1.bf16.msra.mxu0 %v1004
    %1379 = vmatprep.subr.bf16.mxu0 %v1013
    %1380 = vmatpush1.bf16.msra.mxu0 %v1012
    %1381 = vmatprep.subr.bf16.mxu0 %v1021
    %1382 = vmatpush1.bf16.msra.mxu0 %v1020
    %1383 = vmatprep.mubr.bf16.mxu0 %v460
    %1384 = vmatmul.mubr.bf16.gmra.mrb[0].mxu0 %v453
    %v1385 = vpop.f32.mrb[0].mxu0
    %v1386 = vadd.f32 %v417, %v1385
    %v1387 = vpop.f32.mrb[0].mxu0
    %v1388 = vadd.f32 %v421, %v1387
    %v1389 = vpop.f32.mrb[0].mxu0
    %v1390 = vpop.f32.mrb[0].mxu0
    %1391 = vdwg.mxu0
    %1392 = vmatprep.subr.bf16.mxu0 %v1029
    %1393 = vmatpush1.bf16.msra.mxu0 %v1028
    %1394 = vmatprep.subr.bf16.mxu0 %v1037
    %1395 = vmatpush1.bf16.msra.mxu0 %v1036
    %1396 = vmatprep.subr.bf16.mxu0 0
    %1397 = vmatpush1.bf16.msra.mxu0 0
    %1398 = vmatprep.subr.bf16.mxu0 0
    %1399 = vmatpush1.bf16.msra.mxu0 0
    %1400 = vmatprep.subr.bf16.mxu0 0
    %1401 = vmatpush1.bf16.msra.mxu0 0
    %1402 = vmatprep.subr.bf16.mxu0 0
    %1403 = vmatpush1.bf16.msra.mxu0 0
    %1404 = vmatprep.subr.bf16.mxu0 0
    %1405 = vmatpush1.bf16.msra.mxu0 0
    %1406 = vmatprep.subr.bf16.mxu0 0
    %1407 = vmatpush1.bf16.msra.mxu0 0
    %1408 = vmatprep.subr.bf16.mxu0 0
    %1409 = vmatpush1.bf16.msra.mxu0 0
    %1410 = vmatprep.subr.bf16.mxu0 0
    %1411 = vmatpush1.bf16.msra.mxu0 0
    %1412 = vmatprep.subr.bf16.mxu0 0
    %1413 = vmatpush1.bf16.msra.mxu0 0
    %1414 = vmatprep.subr.bf16.mxu0 0
    %1415 = vmatpush1.bf16.msra.mxu0 0
    %1416 = vmatprep.subr.bf16.mxu0 0
    %1417 = vmatpush1.bf16.msra.mxu0 0
    %1418 = vmatprep.subr.bf16.mxu0 0
    %1419 = vmatpush1.bf16.msra.mxu0 0
    %1420 = vmatprep.subr.bf16.mxu0 0
    %1421 = vmatpush1.bf16.msra.mxu0 0
    %1422 = vmatprep.subr.bf16.mxu0 0
    %1423 = vmatpush1.bf16.msra.mxu0 0
    %1424 = vmatprep.mubr.bf16.mxu0 0
    %1425 = vmatmul.mubr.bf16.gmra.mrb[0].mxu0 %v1185
    %v1426 = vpop.f32.mrb[0].mxu0
    %v1427 = vadd.f32 %v1386, %v1426
    %v1428 = vpop.f32.mrb[0].mxu0
    %v1429 = vadd.f32 %v1388, %v1428
    %v1430 = vpop.f32.mrb[0].mxu0
    %v1431 = vpop.f32.mrb[0].mxu0
    %1432 = vdwg.mxu0
    %1433 = vmatprep.subr.bf16.mxu0 %v903
    %1434 = vmatpush1.bf16.msra.mxu0 %v902
    %1435 = vmatprep.subr.bf16.mxu0 %v911
    %1436 = vmatpush1.bf16.msra.mxu0 %v910
    %1437 = vmatprep.subr.bf16.mxu0 %v919
    %1438 = vmatpush1.bf16.msra.mxu0 %v918
    %1439 = vmatprep.subr.bf16.mxu0 %v927
    %1440 = vmatpush1.bf16.msra.mxu0 %v926
    %1441 = vmatprep.subr.bf16.mxu0 %v935
    %1442 = vmatpush1.bf16.msra.mxu0 %v934
    %1443 = vmatprep.subr.bf16.mxu0 %v943
    %1444 = vmatpush1.bf16.msra.mxu0 %v942
    %1445 = vmatprep.subr.bf16.mxu0 %v951
    %1446 = vmatpush1.bf16.msra.mxu0 %v950
    %1447 = vmatprep.subr.bf16.mxu0 %v959
    %1448 = vmatpush1.bf16.msra.mxu0 %v958
    %1449 = vmatprep.subr.bf16.mxu0 %v967
    %1450 = vmatpush1.bf16.msra.mxu0 %v966
    %1451 = vmatprep.subr.bf16.mxu0 %v975
    %1452 = vmatpush1.bf16.msra.mxu0 %v974
    %1453 = vmatprep.subr.bf16.mxu0 %v983
    %1454 = vmatpush1.bf16.msra.mxu0 %v982
    %1455 = vmatprep.subr.bf16.mxu0 %v991
    %1456 = vmatpush1.bf16.msra.mxu0 %v990
    %1457 = vmatprep.subr.bf16.mxu0 %v999
    %1458 = vmatpush1.bf16.msra.mxu0 %v998
    %1459 = vmatprep.subr.bf16.mxu0 %v1007
    %1460 = vmatpush1.bf16.msra.mxu0 %v1006
    %1461 = vmatprep.subr.bf16.mxu0 %v1015
    %1462 = vmatpush1.bf16.msra.mxu0 %v1014
    %1463 = vmatprep.subr.bf16.mxu0 %v1023
    %1464 = vmatpush1.bf16.msra.mxu0 %v1022
    %1465 = vmatprep.mubr.bf16.mxu0 %v460
    %1466 = vmatmul.mubr.bf16.gmra.mrb[0].mxu0 %v453
    %v1467 = vpop.f32.mrb[0].mxu0
    %v1468 = vadd.f32 %v425, %v1467
    %v1469 = vpop.f32.mrb[0].mxu0
    %v1470 = vadd.f32 %v429, %v1469
    %v1471 = vpop.f32.mrb[0].mxu0
    %v1472 = vpop.f32.mrb[0].mxu0
    %1473 = vdwg.mxu0
    %1474 = vmatprep.subr.bf16.mxu0 %v1031
    %1475 = vmatpush1.bf16.msra.mxu0 %v1030
    %1476 = vmatprep.subr.bf16.mxu0 %v1039
    %1477 = vmatpush1.bf16.msra.mxu0 %v1038
    %1478 = vmatprep.subr.bf16.mxu0 0
    %1479 = vmatpush1.bf16.msra.mxu0 0
    %1480 = vmatprep.subr.bf16.mxu0 0
    %1481 = vmatpush1.bf16.msra.mxu0 0
    %1482 = vmatprep.subr.bf16.mxu0 0
    %1483 = vmatpush1.bf16.msra.mxu0 0
    %1484 = vmatprep.subr.bf16.mxu0 0
    %1485 = vmatpush1.bf16.msra.mxu0 0
    %1486 = vmatprep.subr.bf16.mxu0 0
    %1487 = vmatpush1.bf16.msra.mxu0 0
    %1488 = vmatprep.subr.bf16.mxu0 0
    %1489 = vmatpush1.bf16.msra.mxu0 0
    %1490 = vmatprep.subr.bf16.mxu0 0
    %1491 = vmatpush1.bf16.msra.mxu0 0
    %1492 = vmatprep.subr.bf16.mxu0 0
    %1493 = vmatpush1.bf16.msra.mxu0 0
    %1494 = vmatprep.subr.bf16.mxu0 0
    %1495 = vmatpush1.bf16.msra.mxu0 0
    %1496 = vmatprep.subr.bf16.mxu0 0
    %1497 = vmatpush1.bf16.msra.mxu0 0
    %1498 = vmatprep.subr.bf16.mxu0 0
    %1499 = vmatpush1.bf16.msra.mxu0 0
    %1500 = vmatprep.subr.bf16.mxu0 0
    %1501 = vmatpush1.bf16.msra.mxu0 0
    %1502 = vmatprep.subr.bf16.mxu0 0
    %1503 = vmatpush1.bf16.msra.mxu0 0
    %1504 = vmatprep.subr.bf16.mxu0 0
    %1505 = vmatpush1.bf16.msra.mxu0 0
    %1506 = vmatprep.mubr.bf16.mxu0 0
    %1507 = vmatmul.mubr.bf16.gmra.mrb[0].mxu0 %v1185
    %v1508 = vpop.f32.mrb[0].mxu0
    %v1509 = vadd.f32 %v1468, %v1508
    %v1510 = vpop.f32.mrb[0].mxu0
    %v1511 = vadd.f32 %v1470, %v1510
    %v1512 = vpop.f32.mrb[0].mxu0
    %v1513 = vpop.f32.mrb[0].mxu0
    %1514 = vdwg.mxu0
    %v1515 = vmax.f32 %v1263, 0.0
    %v1516 = vmax.f32 %v1265, 0.0
    %v1517 = vmax.f32 %v1345, 0.0
    %v1518 = vmax.f32 %v1347, 0.0
    %v1519 = vmax.f32 %v1427, 0.0
    %v1520 = vmax.f32 %v1429, 0.0
    %v1521 = vmax.f32 %v1509, 0.0
    %v1522 = vmax.f32 %v1511, 0.0
    %v1523 = vpack.c.bf16 %v1515, %v1515
    %v1524 = vpack.c.bf16 %v1516, %v1516
    %v1525 = vpack.c.bf16 %v1517, %v1517
    %v1526 = vpack.c.bf16 %v1518, %v1518
    %v1527 = vpack.c.bf16 %v1519, %v1519
    %v1528 = vpack.c.bf16 %v1520, %v1520
    %v1529 = vpack.c.bf16 %v1521, %v1521
    %v1530 = vpack.c.bf16 %v1522, %v1522
    %v1539 = vcombine.low %v1523, %v1524
    %v1540 = vcombine.low %v1525, %v1526
    %v1541 = vcombine.low %v1527, %v1528
    %v1542 = vcombine.low %v1529, %v1530
    %v1544 = vunpack.c.l.s4 1966171168
    %v1545 = vunpack.c.0.s8 %v1544
    %v1546 = vlaneseq
    %v1547 = vshrl.u32 %v1546, 7
    %v1548 = vsub.s32 %v1545, %v1547
    %v1549 = vrot.slane %v1539, %v1548
    %v1551 = vunpack.c.l.s4 1966171168
    %v1552 = vunpack.c.0.s8 %v1551
    %v1553 = vlaneseq
    %v1554 = vshrl.u32 %v1553, 7
    %v1555 = vsub.s32 %v1552, %v1554
    %v1556 = vrot.slane %v1540, %v1555
    %v1558 = vunpack.c.l.s4 1966171168
    %v1559 = vunpack.c.0.s8 %v1558
    %v1560 = vlaneseq
    %v1561 = vshrl.u32 %v1560, 7
    %v1562 = vsub.s32 %v1559, %v1561
    %v1563 = vrot.slane %v1541, %v1562
    %v1565 = vunpack.c.l.s4 1966171168
    %v1566 = vunpack.c.0.s8 %v1565
    %v1567 = vlaneseq
    %v1568 = vshrl.u32 %v1567, 7
    %v1569 = vsub.s32 %v1566, %v1568
    %v1570 = vrot.slane %v1542, %v1569
    %v1571 = vcombine.low %v1549, %v1556
    %v1572 = vcombine.low %v1563, %v1570
    %v1574 = vunpack.c.l.s4 1966171168
    %v1575 = vunpack.c.0.s8 %v1574
    %v1576 = vlaneseq
    %v1577 = vshrl.u32 %v1576, 7
    %v1578 = vsub.s32 %v1575, %v1577
    %v1579 = vrot.slane %v1571, %v1578
    %v1581 = vunpack.c.l.s4 1966171168
    %v1582 = vunpack.c.0.s8 %v1581
    %v1583 = vlaneseq
    %v1584 = vshrl.u32 %v1583, 7
    %v1585 = vsub.s32 %v1582, %v1584
    %v1586 = vrot.slane %v1572, %v1585
    %v1587 = vcombine.low %v1579, %v1586
    %1589 = vst [vmem:[#allocation11] sm:$0xff] %v1587
    %v1590 = vld [vmem:[#allocation8] sm:$0xff]
    %v1591 = vld [vmem:[#allocation8 + $0x8] sm:$0xff]
    %v1592 = vld [vmem:[#allocation8 + $0x10] sm:$0xff]
    %v1593 = vld [vmem:[#allocation8 + $0x18] sm:$0xff]
    %v1594 = vld [vmem:[#allocation8 + $0x20] sm:$0xff]
    %v1595 = vld [vmem:[#allocation8 + $0x28] sm:$0xff]
    %v1596 = vld [vmem:[#allocation8 + $0x30] sm:$0xff]
    %v1597 = vld [vmem:[#allocation8 + $0x38] sm:$0xff]
    %v1598 = vld [vmem:[#allocation8 + $0x40] sm:$0xff]
    %v1599 = vld [vmem:[#allocation8 + $0x48] sm:$0xff]
    %v1600 = vld [vmem:[#allocation8 + $0x50] sm:$0xff]
    %v1601 = vld [vmem:[#allocation8 + $0x58] sm:$0xff]
    %v1602 = vld [vmem:[#allocation8 + $0x60] sm:$0xff]
    %v1603 = vld [vmem:[#allocation8 + $0x68] sm:$0xff]
    %v1604 = vld [vmem:[#allocation8 + $0x70] sm:$0xff]
    %v1605 = vld [vmem:[#allocation8 + $0x78] sm:$0xff]
    %v1606 = vld [vmem:[#allocation8 + $0x80] sm:$0xff]
    %v1607 = vld [vmem:[#allocation8 + $0x88] sm:$0xff]
    %v1608 = vld [vmem:[#allocation8 + $0x90] sm:$0xff]
    %v1609 = vld [vmem:[#allocation8 + $0x98] sm:$0xff]
    %v1610 = vld [vmem:[#allocation8 + $0xa0] sm:$0xff]
    %v1611 = vld [vmem:[#allocation8 + $0xa8] sm:$0xff]
    %v1612 = vld [vmem:[#allocation8 + $0xb0] sm:$0xff]
    %v1613 = vld [vmem:[#allocation8 + $0xb8] sm:$0xff]
    %v1614 = vld [vmem:[#allocation8 + $0xc0] sm:$0xff]
    %v1615 = vld [vmem:[#allocation8 + $0xc8] sm:$0xff]
    %v1616 = vld [vmem:[#allocation8 + $0xd0] sm:$0xff]
    %v1617 = vld [vmem:[#allocation8 + $0xd8] sm:$0xff]
    %v1618 = vld [vmem:[#allocation8 + $0xe0] sm:$0xff]
    %v1619 = vld [vmem:[#allocation8 + $0xe8] sm:$0xff]
    %v1620 = vld [vmem:[#allocation8 + $0xf0] sm:$0xff]
    %v1621 = vld [vmem:[#allocation8 + $0xf8] sm:$0xff]
    %v1622 = vld [vmem:[#allocation8 + $0x100] sm:$0xff]
    %v1623 = vld [vmem:[#allocation8 + $0x108] sm:$0xff]
    %v1624 = vld [vmem:[#allocation8 + $0x110] sm:$0xff]
    %v1625 = vld [vmem:[#allocation8 + $0x118] sm:$0xff]
    %v1626 = vld [vmem:[#allocation8 + $0x120] sm:$0xff]
    %v1627 = vld [vmem:[#allocation8 + $0x128] sm:$0xff]
    %v1628 = vld [vmem:[#allocation8 + $0x130] sm:$0xff]
    %v1629 = vld [vmem:[#allocation8 + $0x138] sm:$0xff]
    %v1630 = vld [vmem:[#allocation8 + $0x140] sm:$0xff]
    %v1631 = vld [vmem:[#allocation8 + $0x148] sm:$0xff]
    %v1632 = vld [vmem:[#allocation8 + $0x150] sm:$0xff]
    %v1633 = vld [vmem:[#allocation8 + $0x158] sm:$0xff]
    %v1634 = vld [vmem:[#allocation8 + $0x160] sm:$0xff]
    %v1635 = vld [vmem:[#allocation8 + $0x168] sm:$0xff]
    %v1636 = vld [vmem:[#allocation8 + $0x170] sm:$0xff]
    %v1637 = vld [vmem:[#allocation8 + $0x178] sm:$0xff]
    %v1638 = vld [vmem:[#allocation8 + $0x180] sm:$0xff]
    %v1639 = vld [vmem:[#allocation8 + $0x188] sm:$0xff]
    %v1640 = vld [vmem:[#allocation8 + $0x190] sm:$0xff]
    %v1641 = vld [vmem:[#allocation8 + $0x198] sm:$0xff]
    %v1642 = vld [vmem:[#allocation8 + $0x1a0] sm:$0xff]
    %v1643 = vld [vmem:[#allocation8 + $0x1a8] sm:$0xff]
    %v1644 = vld [vmem:[#allocation8 + $0x1b0] sm:$0xff]
    %v1645 = vld [vmem:[#allocation8 + $0x1b8] sm:$0xff]
    %v1646 = vld [vmem:[#allocation8 + $0x1c0] sm:$0xff]
    %v1647 = vld [vmem:[#allocation8 + $0x1c8] sm:$0xff]
    %v1648 = vld [vmem:[#allocation8 + $0x1d0] sm:$0xff]
    %v1649 = vld [vmem:[#allocation8 + $0x1d8] sm:$0xff]
    %v1650 = vld [vmem:[#allocation8 + $0x1e0] sm:$0xff]
    %v1651 = vld [vmem:[#allocation8 + $0x1e8] sm:$0xff]
    %v1652 = vld [vmem:[#allocation8 + $0x1f0] sm:$0xff]
    %v1653 = vld [vmem:[#allocation8 + $0x1f8] sm:$0xff]
    %v1654 = vld [vmem:[#allocation8 + $0x200] sm:$0xff]
    %v1655 = vld [vmem:[#allocation8 + $0x208] sm:$0xff]
    %v1656 = vld [vmem:[#allocation8 + $0x210] sm:$0xff]
    %v1657 = vld [vmem:[#allocation8 + $0x218] sm:$0xff]
    %v1658 = vld [vmem:[#allocation8 + $0x220] sm:$0xff]
    %v1659 = vld [vmem:[#allocation8 + $0x228] sm:$0xff]
    %v1660 = vld [vmem:[#allocation8 + $0x230] sm:$0xff]
    %v1661 = vld [vmem:[#allocation8 + $0x238] sm:$0xff]
    %v1662 = vld [vmem:[#allocation8 + $0x240] sm:$0xff]
    %v1663 = vld [vmem:[#allocation8 + $0x248] sm:$0xff]
    %v1664 = vld [vmem:[#allocation8 + $0x250] sm:$0xff]
    %v1665 = vld [vmem:[#allocation8 + $0x258] sm:$0xff]
    %v1666 = vld [vmem:[#allocation8 + $0x260] sm:$0xff]
    %v1667 = vld [vmem:[#allocation8 + $0x268] sm:$0xff]
    %v1668 = vld [vmem:[#allocation8 + $0x270] sm:$0xff]
    %v1669 = vld [vmem:[#allocation8 + $0x278] sm:$0xff]
    %v1670 = vld [vmem:[#allocation8 + $0x280] sm:$0xff]
    %v1671 = vld [vmem:[#allocation8 + $0x288] sm:$0xff]
    %v1672 = vld [vmem:[#allocation8 + $0x290] sm:$0xff]
    %v1673 = vld [vmem:[#allocation8 + $0x298] sm:$0xff]
    %v1674 = vld [vmem:[#allocation8 + $0x2a0] sm:$0xff]
    %v1675 = vld [vmem:[#allocation8 + $0x2a8] sm:$0xff]
    %v1676 = vld [vmem:[#allocation8 + $0x2b0] sm:$0xff]
    %v1677 = vld [vmem:[#allocation8 + $0x2b8] sm:$0xff]
    %v1678 = vld [vmem:[#allocation8 + $0x2c0] sm:$0xff]
    %v1679 = vld [vmem:[#allocation8 + $0x2c8] sm:$0xff]
    %v1680 = vld [vmem:[#allocation8 + $0x2d0] sm:$0xff]
    %v1681 = vld [vmem:[#allocation8 + $0x2d8] sm:$0xff]
    %v1682 = vld [vmem:[#allocation8 + $0x2e0] sm:$0xff]
    %v1683 = vld [vmem:[#allocation8 + $0x2e8] sm:$0xff]
    %v1684 = vld [vmem:[#allocation8 + $0x2f0] sm:$0xff]
    %v1685 = vld [vmem:[#allocation8 + $0x2f8] sm:$0xff]
    %v1686 = vld [vmem:[#allocation8 + $0x300] sm:$0xff]
    %v1687 = vld [vmem:[#allocation8 + $0x308] sm:$0xff]
    %v1688 = vld [vmem:[#allocation8 + $0x310] sm:$0xff]
    %v1689 = vld [vmem:[#allocation8 + $0x318] sm:$0xff]
    %v1690 = vld [vmem:[#allocation8 + $0x320] sm:$0xff]
    %v1691 = vld [vmem:[#allocation8 + $0x328] sm:$0xff]
    %v1692 = vld [vmem:[#allocation8 + $0x330] sm:$0xff]
    %v1693 = vld [vmem:[#allocation8 + $0x338] sm:$0xff]
    %v1694 = vld [vmem:[#allocation8 + $0x340] sm:$0xff]
    %v1695 = vld [vmem:[#allocation8 + $0x348] sm:$0xff]
    %v1696 = vld [vmem:[#allocation8 + $0x350] sm:$0xff]
    %v1697 = vld [vmem:[#allocation8 + $0x358] sm:$0xff]
    %v1698 = vld [vmem:[#allocation8 + $0x360] sm:$0xff]
    %v1699 = vld [vmem:[#allocation8 + $0x368] sm:$0xff]
    %v1700 = vld [vmem:[#allocation8 + $0x370] sm:$0xff]
    %v1701 = vld [vmem:[#allocation8 + $0x378] sm:$0xff]
    %v1702 = vld [vmem:[#allocation8 + $0x380] sm:$0xff]
    %v1703 = vld [vmem:[#allocation8 + $0x388] sm:$0xff]
    %v1704 = vld [vmem:[#allocation8 + $0x390] sm:$0xff]
    %v1705 = vld [vmem:[#allocation8 + $0x398] sm:$0xff]
    %v1706 = vld [vmem:[#allocation8 + $0x3a0] sm:$0xff]
    %v1707 = vld [vmem:[#allocation8 + $0x3a8] sm:$0xff]
    %v1708 = vld [vmem:[#allocation8 + $0x3b0] sm:$0xff]
    %v1709 = vld [vmem:[#allocation8 + $0x3b8] sm:$0xff]
    %v1710 = vld [vmem:[#allocation8 + $0x3c0] sm:$0xff]
    %v1711 = vld [vmem:[#allocation8 + $0x3c8] sm:$0xff]
    %v1712 = vld [vmem:[#allocation8 + $0x3d0] sm:$0xff]
    %v1713 = vld [vmem:[#allocation8 + $0x3d8] sm:$0xff]
    %v1714 = vld [vmem:[#allocation8 + $0x3e0] sm:$0xff]
    %v1715 = vld [vmem:[#allocation8 + $0x3e8] sm:$0xff]
    %v1716 = vld [vmem:[#allocation8 + $0x3f0] sm:$0xff]
    %v1717 = vld [vmem:[#allocation8 + $0x3f8] sm:$0xff]
    %v1718 = vld [vmem:[#allocation8 + $0x400] sm:$0xff]
    %v1719 = vld [vmem:[#allocation8 + $0x408] sm:$0xff]
    %v1720 = vld [vmem:[#allocation8 + $0x410] sm:$0xff]
    %v1721 = vld [vmem:[#allocation8 + $0x418] sm:$0xff]
    %v1722 = vld [vmem:[#allocation8 + $0x420] sm:$0xff]
    %v1723 = vld [vmem:[#allocation8 + $0x428] sm:$0xff]
    %v1724 = vld [vmem:[#allocation8 + $0x430] sm:$0xff]
    %v1725 = vld [vmem:[#allocation8 + $0x438] sm:$0xff]
    %v1726 = vld [vmem:[#allocation8 + $0x440] sm:$0xff]
    %v1727 = vld [vmem:[#allocation8 + $0x448] sm:$0xff]
    %v1728 = vld [vmem:[#allocation8 + $0x450] sm:$0xff]
    %v1729 = vld [vmem:[#allocation8 + $0x458] sm:$0xff]
    %v1730 = vld [vmem:[#allocation8 + $0x460] sm:$0xff]
    %v1731 = vld [vmem:[#allocation8 + $0x468] sm:$0xff]
    %v1732 = vld [vmem:[#allocation8 + $0x470] sm:$0xff]
    %v1733 = vld [vmem:[#allocation8 + $0x478] sm:$0xff]
    %v1878 = vunpack.c.l.b16 %v1590
    %v1879 = vunpack.c.h.b16 %v1590
    %v1880 = vunpack.c.l.b16 %v1591
    %v1881 = vunpack.c.h.b16 %v1591
    %v1882 = vunpack.c.l.b16 %v1592
    %v1883 = vunpack.c.h.b16 %v1592
    %v1884 = vunpack.c.l.b16 %v1593
    %v1885 = vunpack.c.h.b16 %v1593
    %v1886 = vunpack.c.l.b16 %v1594
    %v1887 = vunpack.c.h.b16 %v1594
    %v1888 = vunpack.c.l.b16 %v1595
    %v1889 = vunpack.c.h.b16 %v1595
    %v1890 = vunpack.c.l.b16 %v1596
    %v1891 = vunpack.c.h.b16 %v1596
    %v1892 = vunpack.c.l.b16 %v1597
    %v1893 = vunpack.c.h.b16 %v1597
    %v1894 = vunpack.c.l.b16 %v1598
    %v1895 = vunpack.c.h.b16 %v1598
    %v1896 = vunpack.c.l.b16 %v1599
    %v1897 = vunpack.c.h.b16 %v1599
    %v1898 = vunpack.c.l.b16 %v1600
    %v1899 = vunpack.c.h.b16 %v1600
    %v1900 = vunpack.c.l.b16 %v1601
    %v1901 = vunpack.c.h.b16 %v1601
    %v1902 = vunpack.c.l.b16 %v1602
    %v1903 = vunpack.c.h.b16 %v1602
    %v1904 = vunpack.c.l.b16 %v1603
    %v1905 = vunpack.c.h.b16 %v1603
    %v1906 = vunpack.c.l.b16 %v1604
    %v1907 = vunpack.c.h.b16 %v1604
    %v1908 = vunpack.c.l.b16 %v1605
    %v1909 = vunpack.c.h.b16 %v1605
    %v1910 = vunpack.c.l.b16 %v1606
    %v1911 = vunpack.c.h.b16 %v1606
    %v1912 = vunpack.c.l.b16 %v1607
    %v1913 = vunpack.c.h.b16 %v1607
    %v1914 = vunpack.c.l.b16 %v1608
    %v1915 = vunpack.c.h.b16 %v1608
    %v1916 = vunpack.c.l.b16 %v1609
    %v1917 = vunpack.c.h.b16 %v1609
    %v1918 = vunpack.c.l.b16 %v1610
    %v1919 = vunpack.c.h.b16 %v1610
    %v1920 = vunpack.c.l.b16 %v1611
    %v1921 = vunpack.c.h.b16 %v1611
    %v1922 = vunpack.c.l.b16 %v1612
    %v1923 = vunpack.c.h.b16 %v1612
    %v1924 = vunpack.c.l.b16 %v1613
    %v1925 = vunpack.c.h.b16 %v1613
    %v1926 = vunpack.c.l.b16 %v1614
    %v1927 = vunpack.c.h.b16 %v1614
    %v1928 = vunpack.c.l.b16 %v1615
    %v1929 = vunpack.c.h.b16 %v1615
    %v1930 = vunpack.c.l.b16 %v1616
    %v1931 = vunpack.c.h.b16 %v1616
    %v1932 = vunpack.c.l.b16 %v1617
    %v1933 = vunpack.c.h.b16 %v1617
    %v1934 = vunpack.c.l.b16 %v1618
    %v1935 = vunpack.c.h.b16 %v1618
    %v1936 = vunpack.c.l.b16 %v1619
    %v1937 = vunpack.c.h.b16 %v1619
    %v1938 = vunpack.c.l.b16 %v1620
    %v1939 = vunpack.c.h.b16 %v1620
    %v1940 = vunpack.c.l.b16 %v1621
    %v1941 = vunpack.c.h.b16 %v1621
    %v1942 = vunpack.c.l.b16 %v1622
    %v1943 = vunpack.c.h.b16 %v1622
    %v1944 = vunpack.c.l.b16 %v1623
    %v1945 = vunpack.c.h.b16 %v1623
    %v1946 = vunpack.c.l.b16 %v1624
    %v1947 = vunpack.c.h.b16 %v1624
    %v1948 = vunpack.c.l.b16 %v1625
    %v1949 = vunpack.c.h.b16 %v1625
    %v1950 = vunpack.c.l.b16 %v1626
    %v1951 = vunpack.c.h.b16 %v1626
    %v1952 = vunpack.c.l.b16 %v1627
    %v1953 = vunpack.c.h.b16 %v1627
    %v1954 = vunpack.c.l.b16 %v1628
    %v1955 = vunpack.c.h.b16 %v1628
    %v1956 = vunpack.c.l.b16 %v1629
    %v1957 = vunpack.c.h.b16 %v1629
    %v1958 = vunpack.c.l.b16 %v1630
    %v1959 = vunpack.c.h.b16 %v1630
    %v1960 = vunpack.c.l.b16 %v1631
    %v1961 = vunpack.c.h.b16 %v1631
    %v1962 = vunpack.c.l.b16 %v1632
    %v1963 = vunpack.c.h.b16 %v1632
    %v1964 = vunpack.c.l.b16 %v1633
    %v1965 = vunpack.c.h.b16 %v1633
    %v1966 = vunpack.c.l.b16 %v1634
    %v1967 = vunpack.c.h.b16 %v1634
    %v1968 = vunpack.c.l.b16 %v1635
    %v1969 = vunpack.c.h.b16 %v1635
    %v1970 = vunpack.c.l.b16 %v1636
    %v1971 = vunpack.c.h.b16 %v1636
    %v1972 = vunpack.c.l.b16 %v1637
    %v1973 = vunpack.c.h.b16 %v1637
    %v1974 = vunpack.c.l.b16 %v1638
    %v1975 = vunpack.c.h.b16 %v1638
    %v1976 = vunpack.c.l.b16 %v1639
    %v1977 = vunpack.c.h.b16 %v1639
    %v1978 = vunpack.c.l.b16 %v1640
    %v1979 = vunpack.c.h.b16 %v1640
    %v1980 = vunpack.c.l.b16 %v1641
    %v1981 = vunpack.c.h.b16 %v1641
    %v1982 = vunpack.c.l.b16 %v1642
    %v1983 = vunpack.c.h.b16 %v1642
    %v1984 = vunpack.c.l.b16 %v1643
    %v1985 = vunpack.c.h.b16 %v1643
    %v1986 = vunpack.c.l.b16 %v1644
    %v1987 = vunpack.c.h.b16 %v1644
    %v1988 = vunpack.c.l.b16 %v1645
    %v1989 = vunpack.c.h.b16 %v1645
    %v1990 = vunpack.c.l.b16 %v1646
    %v1991 = vunpack.c.h.b16 %v1646
    %v1992 = vunpack.c.l.b16 %v1647
    %v1993 = vunpack.c.h.b16 %v1647
    %v1994 = vunpack.c.l.b16 %v1648
    %v1995 = vunpack.c.h.b16 %v1648
    %v1996 = vunpack.c.l.b16 %v1649
    %v1997 = vunpack.c.h.b16 %v1649
    %v1998 = vunpack.c.l.b16 %v1650
    %v1999 = vunpack.c.h.b16 %v1650
    %v2000 = vunpack.c.l.b16 %v1651
    %v2001 = vunpack.c.h.b16 %v1651
    %v2002 = vunpack.c.l.b16 %v1652
    %v2003 = vunpack.c.h.b16 %v1652
    %v2004 = vunpack.c.l.b16 %v1653
    %v2005 = vunpack.c.h.b16 %v1653
    %v2006 = vunpack.c.l.b16 %v1654
    %v2007 = vunpack.c.h.b16 %v1654
    %v2008 = vunpack.c.l.b16 %v1655
    %v2009 = vunpack.c.h.b16 %v1655
    %v2010 = vunpack.c.l.b16 %v1656
    %v2011 = vunpack.c.h.b16 %v1656
    %v2012 = vunpack.c.l.b16 %v1657
    %v2013 = vunpack.c.h.b16 %v1657
    %v2014 = vunpack.c.l.b16 %v1658
    %v2015 = vunpack.c.h.b16 %v1658
    %v2016 = vunpack.c.l.b16 %v1659
    %v2017 = vunpack.c.h.b16 %v1659
    %v2018 = vunpack.c.l.b16 %v1660
    %v2019 = vunpack.c.h.b16 %v1660
    %v2020 = vunpack.c.l.b16 %v1661
    %v2021 = vunpack.c.h.b16 %v1661
    %v2022 = vunpack.c.l.b16 %v1662
    %v2023 = vunpack.c.h.b16 %v1662
    %v2024 = vunpack.c.l.b16 %v1663
    %v2025 = vunpack.c.h.b16 %v1663
    %v2026 = vunpack.c.l.b16 %v1664
    %v2027 = vunpack.c.h.b16 %v1664
    %v2028 = vunpack.c.l.b16 %v1665
    %v2029 = vunpack.c.h.b16 %v1665
    %v2030 = vunpack.c.l.b16 %v1666
    %v2031 = vunpack.c.h.b16 %v1666
    %v2032 = vunpack.c.l.b16 %v1667
    %v2033 = vunpack.c.h.b16 %v1667
    %v2034 = vunpack.c.l.b16 %v1668
    %v2035 = vunpack.c.h.b16 %v1668
    %v2036 = vunpack.c.l.b16 %v1669
    %v2037 = vunpack.c.h.b16 %v1669
    %v2038 = vunpack.c.l.b16 %v1670
    %v2039 = vunpack.c.h.b16 %v1670
    %v2040 = vunpack.c.l.b16 %v1671
    %v2041 = vunpack.c.h.b16 %v1671
    %v2042 = vunpack.c.l.b16 %v1672
    %v2043 = vunpack.c.h.b16 %v1672
    %v2044 = vunpack.c.l.b16 %v1673
    %v2045 = vunpack.c.h.b16 %v1673
    %v2046 = vunpack.c.l.b16 %v1674
    %v2047 = vunpack.c.h.b16 %v1674
    %v2048 = vunpack.c.l.b16 %v1675
    %v2049 = vunpack.c.h.b16 %v1675
    %v2050 = vunpack.c.l.b16 %v1676
    %v2051 = vunpack.c.h.b16 %v1676
    %v2052 = vunpack.c.l.b16 %v1677
    %v2053 = vunpack.c.h.b16 %v1677
    %v2054 = vunpack.c.l.b16 %v1678
    %v2055 = vunpack.c.h.b16 %v1678
    %v2056 = vunpack.c.l.b16 %v1679
    %v2057 = vunpack.c.h.b16 %v1679
    %v2058 = vunpack.c.l.b16 %v1680
    %v2059 = vunpack.c.h.b16 %v1680
    %v2060 = vunpack.c.l.b16 %v1681
    %v2061 = vunpack.c.h.b16 %v1681
    %v2062 = vunpack.c.l.b16 %v1682
    %v2063 = vunpack.c.h.b16 %v1682
    %v2064 = vunpack.c.l.b16 %v1683
    %v2065 = vunpack.c.h.b16 %v1683
    %v2066 = vunpack.c.l.b16 %v1684
    %v2067 = vunpack.c.h.b16 %v1684
    %v2068 = vunpack.c.l.b16 %v1685
    %v2069 = vunpack.c.h.b16 %v1685
    %v2070 = vunpack.c.l.b16 %v1686
    %v2071 = vunpack.c.h.b16 %v1686
    %v2072 = vunpack.c.l.b16 %v1687
    %v2073 = vunpack.c.h.b16 %v1687
    %v2074 = vunpack.c.l.b16 %v1688
    %v2075 = vunpack.c.h.b16 %v1688
    %v2076 = vunpack.c.l.b16 %v1689
    %v2077 = vunpack.c.h.b16 %v1689
    %v2078 = vunpack.c.l.b16 %v1690
    %v2079 = vunpack.c.h.b16 %v1690
    %v2080 = vunpack.c.l.b16 %v1691
    %v2081 = vunpack.c.h.b16 %v1691
    %v2082 = vunpack.c.l.b16 %v1692
    %v2083 = vunpack.c.h.b16 %v1692
    %v2084 = vunpack.c.l.b16 %v1693
    %v2085 = vunpack.c.h.b16 %v1693
    %v2086 = vunpack.c.l.b16 %v1694
    %v2087 = vunpack.c.h.b16 %v1694
    %v2088 = vunpack.c.l.b16 %v1695
    %v2089 = vunpack.c.h.b16 %v1695
    %v2090 = vunpack.c.l.b16 %v1696
    %v2091 = vunpack.c.h.b16 %v1696
    %v2092 = vunpack.c.l.b16 %v1697
    %v2093 = vunpack.c.h.b16 %v1697
    %v2094 = vunpack.c.l.b16 %v1698
    %v2095 = vunpack.c.h.b16 %v1698
    %v2096 = vunpack.c.l.b16 %v1699
    %v2097 = vunpack.c.h.b16 %v1699
    %v2098 = vunpack.c.l.b16 %v1700
    %v2099 = vunpack.c.h.b16 %v1700
    %v2100 = vunpack.c.l.b16 %v1701
    %v2101 = vunpack.c.h.b16 %v1701
    %v2102 = vunpack.c.l.b16 %v1702
    %v2103 = vunpack.c.h.b16 %v1702
    %v2104 = vunpack.c.l.b16 %v1703
    %v2105 = vunpack.c.h.b16 %v1703
    %v2106 = vunpack.c.l.b16 %v1704
    %v2107 = vunpack.c.h.b16 %v1704
    %v2108 = vunpack.c.l.b16 %v1705
    %v2109 = vunpack.c.h.b16 %v1705
    %v2110 = vunpack.c.l.b16 %v1706
    %v2111 = vunpack.c.h.b16 %v1706
    %v2112 = vunpack.c.l.b16 %v1707
    %v2113 = vunpack.c.h.b16 %v1707
    %v2114 = vunpack.c.l.b16 %v1708
    %v2115 = vunpack.c.h.b16 %v1708
    %v2116 = vunpack.c.l.b16 %v1709
    %v2117 = vunpack.c.h.b16 %v1709
    %v2118 = vunpack.c.l.b16 %v1710
    %v2119 = vunpack.c.h.b16 %v1710
    %v2120 = vunpack.c.l.b16 %v1711
    %v2121 = vunpack.c.h.b16 %v1711
    %v2122 = vunpack.c.l.b16 %v1712
    %v2123 = vunpack.c.h.b16 %v1712
    %v2124 = vunpack.c.l.b16 %v1713
    %v2125 = vunpack.c.h.b16 %v1713
    %v2126 = vunpack.c.l.b16 %v1714
    %v2127 = vunpack.c.h.b16 %v1714
    %v2128 = vunpack.c.l.b16 %v1715
    %v2129 = vunpack.c.h.b16 %v1715
    %v2130 = vunpack.c.l.b16 %v1716
    %v2131 = vunpack.c.h.b16 %v1716
    %v2132 = vunpack.c.l.b16 %v1717
    %v2133 = vunpack.c.h.b16 %v1717
    %v2134 = vunpack.c.l.b16 %v1718
    %v2135 = vunpack.c.h.b16 %v1718
    %v2136 = vunpack.c.l.b16 %v1719
    %v2137 = vunpack.c.h.b16 %v1719
    %v2138 = vunpack.c.l.b16 %v1720
    %v2139 = vunpack.c.h.b16 %v1720
    %v2140 = vunpack.c.l.b16 %v1721
    %v2141 = vunpack.c.h.b16 %v1721
    %v2142 = vunpack.c.l.b16 %v1722
    %v2143 = vunpack.c.h.b16 %v1722
    %v2144 = vunpack.c.l.b16 %v1723
    %v2145 = vunpack.c.h.b16 %v1723
    %v2146 = vunpack.c.l.b16 %v1724
    %v2147 = vunpack.c.h.b16 %v1724
    %v2148 = vunpack.c.l.b16 %v1725
    %v2149 = vunpack.c.h.b16 %v1725
    %v2150 = vunpack.c.l.b16 %v1726
    %v2151 = vunpack.c.h.b16 %v1726
    %v2152 = vunpack.c.l.b16 %v1727
    %v2153 = vunpack.c.h.b16 %v1727
    %v2154 = vunpack.c.l.b16 %v1728
    %v2155 = vunpack.c.h.b16 %v1728
    %v2156 = vunpack.c.l.b16 %v1729
    %v2157 = vunpack.c.h.b16 %v1729
    %v2158 = vunpack.c.l.b16 %v1730
    %v2159 = vunpack.c.h.b16 %v1730
    %v2160 = vunpack.c.l.b16 %v1731
    %v2161 = vunpack.c.h.b16 %v1731
    %v2162 = vunpack.c.l.b16 %v1732
    %v2163 = vunpack.c.h.b16 %v1732
    %v2164 = vunpack.c.l.b16 %v1733
    %v2165 = vunpack.c.h.b16 %v1733
    %v2166 = vpack.c.b16 %v1886, %v1878
    %v2167 = vpack.c.b16 %v1887, %v1879
    %v2168 = vpack.c.b16 %v1888, %v1880
    %v2169 = vpack.c.b16 %v1889, %v1881
    %v2170 = vpack.c.b16 %v1890, %v1882
    %v2171 = vpack.c.b16 %v1891, %v1883
    %v2172 = vpack.c.b16 %v1892, %v1884
    %v2173 = vpack.c.b16 %v1893, %v1885
    %v2174 = vpack.c.b16 %v1902, %v1894
    %v2175 = vpack.c.b16 %v1903, %v1895
    %v2176 = vpack.c.b16 %v1904, %v1896
    %v2177 = vpack.c.b16 %v1905, %v1897
    %v2178 = vpack.c.b16 %v1906, %v1898
    %v2179 = vpack.c.b16 %v1907, %v1899
    %v2180 = vpack.c.b16 %v1908, %v1900
    %v2181 = vpack.c.b16 %v1909, %v1901
    %v2182 = vpack.c.b16 %v1918, %v1910
    %v2183 = vpack.c.b16 %v1919, %v1911
    %v2184 = vpack.c.b16 %v1920, %v1912
    %v2185 = vpack.c.b16 %v1921, %v1913
    %v2186 = vpack.c.b16 %v1922, %v1914
    %v2187 = vpack.c.b16 %v1923, %v1915
    %v2188 = vpack.c.b16 %v1924, %v1916
    %v2189 = vpack.c.b16 %v1925, %v1917
    %v2190 = vpack.c.b16 %v1934, %v1926
    %v2191 = vpack.c.b16 %v1935, %v1927
    %v2192 = vpack.c.b16 %v1936, %v1928
    %v2193 = vpack.c.b16 %v1937, %v1929
    %v2194 = vpack.c.b16 %v1938, %v1930
    %v2195 = vpack.c.b16 %v1939, %v1931
    %v2196 = vpack.c.b16 %v1940, %v1932
    %v2197 = vpack.c.b16 %v1941, %v1933
    %v2198 = vpack.c.b16 %v1950, %v1942
    %v2199 = vpack.c.b16 %v1951, %v1943
    %v2200 = vpack.c.b16 %v1952, %v1944
    %v2201 = vpack.c.b16 %v1953, %v1945
    %v2202 = vpack.c.b16 %v1954, %v1946
    %v2203 = vpack.c.b16 %v1955, %v1947
    %v2204 = vpack.c.b16 %v1956, %v1948
    %v2205 = vpack.c.b16 %v1957, %v1949
    %v2206 = vpack.c.b16 %v1966, %v1958
    %v2207 = vpack.c.b16 %v1967, %v1959
    %v2208 = vpack.c.b16 %v1968, %v1960
    %v2209 = vpack.c.b16 %v1969, %v1961
    %v2210 = vpack.c.b16 %v1970, %v1962
    %v2211 = vpack.c.b16 %v1971, %v1963
    %v2212 = vpack.c.b16 %v1972, %v1964
    %v2213 = vpack.c.b16 %v1973, %v1965
    %v2214 = vpack.c.b16 %v1982, %v1974
    %v2215 = vpack.c.b16 %v1983, %v1975
    %v2216 = vpack.c.b16 %v1984, %v1976
    %v2217 = vpack.c.b16 %v1985, %v1977
    %v2218 = vpack.c.b16 %v1986, %v1978
    %v2219 = vpack.c.b16 %v1987, %v1979
    %v2220 = vpack.c.b16 %v1988, %v1980
    %v2221 = vpack.c.b16 %v1989, %v1981
    %v2222 = vpack.c.b16 %v1998, %v1990
    %v2223 = vpack.c.b16 %v1999, %v1991
    %v2224 = vpack.c.b16 %v2000, %v1992
    %v2225 = vpack.c.b16 %v2001, %v1993
    %v2226 = vpack.c.b16 %v2002, %v1994
    %v2227 = vpack.c.b16 %v2003, %v1995
    %v2228 = vpack.c.b16 %v2004, %v1996
    %v2229 = vpack.c.b16 %v2005, %v1997
    %v2230 = vpack.c.b16 %v2014, %v2006
    %v2231 = vpack.c.b16 %v2015, %v2007
    %v2232 = vpack.c.b16 %v2016, %v2008
    %v2233 = vpack.c.b16 %v2017, %v2009
    %v2234 = vpack.c.b16 %v2018, %v2010
    %v2235 = vpack.c.b16 %v2019, %v2011
    %v2236 = vpack.c.b16 %v2020, %v2012
    %v2237 = vpack.c.b16 %v2021, %v2013
    %v2238 = vpack.c.b16 %v2030, %v2022
    %v2239 = vpack.c.b16 %v2031, %v2023
    %v2240 = vpack.c.b16 %v2032, %v2024
    %v2241 = vpack.c.b16 %v2033, %v2025
    %v2242 = vpack.c.b16 %v2034, %v2026
    %v2243 = vpack.c.b16 %v2035, %v2027
    %v2244 = vpack.c.b16 %v2036, %v2028
    %v2245 = vpack.c.b16 %v2037, %v2029
    %v2246 = vpack.c.b16 %v2046, %v2038
    %v2247 = vpack.c.b16 %v2047, %v2039
    %v2248 = vpack.c.b16 %v2048, %v2040
    %v2249 = vpack.c.b16 %v2049, %v2041
    %v2250 = vpack.c.b16 %v2050, %v2042
    %v2251 = vpack.c.b16 %v2051, %v2043
    %v2252 = vpack.c.b16 %v2052, %v2044
    %v2253 = vpack.c.b16 %v2053, %v2045
    %v2254 = vpack.c.b16 %v2062, %v2054
    %v2255 = vpack.c.b16 %v2063, %v2055
    %v2256 = vpack.c.b16 %v2064, %v2056
    %v2257 = vpack.c.b16 %v2065, %v2057
    %v2258 = vpack.c.b16 %v2066, %v2058
    %v2259 = vpack.c.b16 %v2067, %v2059
    %v2260 = vpack.c.b16 %v2068, %v2060
    %v2261 = vpack.c.b16 %v2069, %v2061
    %v2262 = vpack.c.b16 %v2078, %v2070
    %v2263 = vpack.c.b16 %v2079, %v2071
    %v2264 = vpack.c.b16 %v2080, %v2072
    %v2265 = vpack.c.b16 %v2081, %v2073
    %v2266 = vpack.c.b16 %v2082, %v2074
    %v2267 = vpack.c.b16 %v2083, %v2075
    %v2268 = vpack.c.b16 %v2084, %v2076
    %v2269 = vpack.c.b16 %v2085, %v2077
    %v2270 = vpack.c.b16 %v2094, %v2086
    %v2271 = vpack.c.b16 %v2095, %v2087
    %v2272 = vpack.c.b16 %v2096, %v2088
    %v2273 = vpack.c.b16 %v2097, %v2089
    %v2274 = vpack.c.b16 %v2098, %v2090
    %v2275 = vpack.c.b16 %v2099, %v2091
    %v2276 = vpack.c.b16 %v2100, %v2092
    %v2277 = vpack.c.b16 %v2101, %v2093
    %v2278 = vpack.c.b16 %v2110, %v2102
    %v2279 = vpack.c.b16 %v2111, %v2103
    %v2280 = vpack.c.b16 %v2112, %v2104
    %v2281 = vpack.c.b16 %v2113, %v2105
    %v2282 = vpack.c.b16 %v2114, %v2106
    %v2283 = vpack.c.b16 %v2115, %v2107
    %v2284 = vpack.c.b16 %v2116, %v2108
    %v2285 = vpack.c.b16 %v2117, %v2109
    %v2286 = vpack.c.b16 %v2126, %v2118
    %v2287 = vpack.c.b16 %v2127, %v2119
    %v2288 = vpack.c.b16 %v2128, %v2120
    %v2289 = vpack.c.b16 %v2129, %v2121
    %v2290 = vpack.c.b16 %v2130, %v2122
    %v2291 = vpack.c.b16 %v2131, %v2123
    %v2292 = vpack.c.b16 %v2132, %v2124
    %v2293 = vpack.c.b16 %v2133, %v2125
    %v2294 = vpack.c.b16 %v2142, %v2134
    %v2295 = vpack.c.b16 %v2143, %v2135
    %v2296 = vpack.c.b16 %v2144, %v2136
    %v2297 = vpack.c.b16 %v2145, %v2137
    %v2298 = vpack.c.b16 %v2146, %v2138
    %v2299 = vpack.c.b16 %v2147, %v2139
    %v2300 = vpack.c.b16 %v2148, %v2140
    %v2301 = vpack.c.b16 %v2149, %v2141
    %v2302 = vpack.c.b16 %v2158, %v2150
    %v2303 = vpack.c.b16 %v2159, %v2151
    %v2304 = vpack.c.b16 %v2160, %v2152
    %v2305 = vpack.c.b16 %v2161, %v2153
    %v2306 = vpack.c.b16 %v2162, %v2154
    %v2307 = vpack.c.b16 %v2163, %v2155
    %v2308 = vpack.c.b16 %v2164, %v2156
    %v2309 = vpack.c.b16 %v2165, %v2157
    %2454 = vmatprep.subr.bf16.mxu0 %v2167
    %2455 = vmatpush1.bf16.msra.mxu0 %v2166
    %2456 = vmatprep.subr.bf16.mxu0 %v2175
    %2457 = vmatpush1.bf16.msra.mxu0 %v2174
    %2458 = vmatprep.subr.bf16.mxu0 %v2183
    %2459 = vmatpush1.bf16.msra.mxu0 %v2182
    %2460 = vmatprep.subr.bf16.mxu0 %v2191
    %2461 = vmatpush1.bf16.msra.mxu0 %v2190
    %2462 = vmatprep.subr.bf16.mxu0 %v2199
    %2463 = vmatpush1.bf16.msra.mxu0 %v2198
    %2464 = vmatprep.subr.bf16.mxu0 %v2207
    %2465 = vmatpush1.bf16.msra.mxu0 %v2206
    %2466 = vmatprep.subr.bf16.mxu0 %v2215
    %2467 = vmatpush1.bf16.msra.mxu0 %v2214
    %2468 = vmatprep.subr.bf16.mxu0 %v2223
    %2469 = vmatpush1.bf16.msra.mxu0 %v2222
    %2470 = vmatprep.subr.bf16.mxu0 %v2231
    %2471 = vmatpush1.bf16.msra.mxu0 %v2230
    %2472 = vmatprep.subr.bf16.mxu0 %v2239
    %2473 = vmatpush1.bf16.msra.mxu0 %v2238
    %2474 = vmatprep.subr.bf16.mxu0 %v2247
    %2475 = vmatpush1.bf16.msra.mxu0 %v2246
    %2476 = vmatprep.subr.bf16.mxu0 %v2255
    %2477 = vmatpush1.bf16.msra.mxu0 %v2254
    %2478 = vmatprep.subr.bf16.mxu0 %v2263
    %2479 = vmatpush1.bf16.msra.mxu0 %v2262
    %2480 = vmatprep.subr.bf16.mxu0 %v2271
    %2481 = vmatpush1.bf16.msra.mxu0 %v2270
    %2482 = vmatprep.subr.bf16.mxu0 %v2279
    %2483 = vmatpush1.bf16.msra.mxu0 %v2278
    %2484 = vmatprep.subr.bf16.mxu0 %v2287
    %2485 = vmatpush1.bf16.msra.mxu0 %v2286
    %2486 = vmatprep.mubr.bf16.mxu0 %v460
    %2487 = vmatmul.mubr.bf16.gmra.mrb[0].mxu0 %v453
    %v2488 = vpop.f32.mrb[0].mxu0
    %v2489 = vadd.f32 0.0, %v2488
    %v2490 = vpop.f32.mrb[0].mxu0
    %v2491 = vadd.f32 0.0, %v2490
    %v2492 = vpop.f32.mrb[0].mxu0
    %v2493 = vpop.f32.mrb[0].mxu0
    %2494 = vdwg.mxu0
    %2495 = vmatprep.subr.bf16.mxu0 %v2295
    %2496 = vmatpush1.bf16.msra.mxu0 %v2294
    %2497 = vmatprep.subr.bf16.mxu0 %v2303
    %2498 = vmatpush1.bf16.msra.mxu0 %v2302
    %2499 = vmatprep.subr.bf16.mxu0 0
    %2500 = vmatpush1.bf16.msra.mxu0 0
    %2501 = vmatprep.subr.bf16.mxu0 0
    %2502 = vmatpush1.bf16.msra.mxu0 0
    %2503 = vmatprep.subr.bf16.mxu0 0
    %2504 = vmatpush1.bf16.msra.mxu0 0
    %2505 = vmatprep.subr.bf16.mxu0 0
    %2506 = vmatpush1.bf16.msra.mxu0 0
    %2507 = vmatprep.subr.bf16.mxu0 0
    %2508 = vmatpush1.bf16.msra.mxu0 0
    %2509 = vmatprep.subr.bf16.mxu0 0
    %2510 = vmatpush1.bf16.msra.mxu0 0
    %2511 = vmatprep.subr.bf16.mxu0 0
    %2512 = vmatpush1.bf16.msra.mxu0 0
    %2513 = vmatprep.subr.bf16.mxu0 0
    %2514 = vmatpush1.bf16.msra.mxu0 0
    %2515 = vmatprep.subr.bf16.mxu0 0
    %2516 = vmatpush1.bf16.msra.mxu0 0
    %2517 = vmatprep.subr.bf16.mxu0 0
    %2518 = vmatpush1.bf16.msra.mxu0 0
    %2519 = vmatprep.subr.bf16.mxu0 0
    %2520 = vmatpush1.bf16.msra.mxu0 0
    %2521 = vmatprep.subr.bf16.mxu0 0
    %2522 = vmatpush1.bf16.msra.mxu0 0
    %2523 = vmatprep.subr.bf16.mxu0 0
    %2524 = vmatpush1.bf16.msra.mxu0 0
    %2525 = vmatprep.subr.bf16.mxu0 0
    %2526 = vmatpush1.bf16.msra.mxu0 0
    %2527 = vmatprep.mubr.bf16.mxu0 0
    %2528 = vmatmul.mubr.bf16.gmra.mrb[0].mxu0 %v1185
    %v2529 = vpop.f32.mrb[0].mxu0
    %v2530 = vadd.f32 %v2489, %v2529
    %v2531 = vpop.f32.mrb[0].mxu0
    %v2532 = vadd.f32 %v2491, %v2531
    %v2533 = vpop.f32.mrb[0].mxu0
    %v2534 = vpop.f32.mrb[0].mxu0
    %2535 = vdwg.mxu0
    %2536 = vmatprep.subr.bf16.mxu0 %v2169
    %2537 = vmatpush1.bf16.msra.mxu0 %v2168
    %2538 = vmatprep.subr.bf16.mxu0 %v2177
    %2539 = vmatpush1.bf16.msra.mxu0 %v2176
    %2540 = vmatprep.subr.bf16.mxu0 %v2185
    %2541 = vmatpush1.bf16.msra.mxu0 %v2184
    %2542 = vmatprep.subr.bf16.mxu0 %v2193
    %2543 = vmatpush1.bf16.msra.mxu0 %v2192
    %2544 = vmatprep.subr.bf16.mxu0 %v2201
    %2545 = vmatpush1.bf16.msra.mxu0 %v2200
    %2546 = vmatprep.subr.bf16.mxu0 %v2209
    %2547 = vmatpush1.bf16.msra.mxu0 %v2208
    %2548 = vmatprep.subr.bf16.mxu0 %v2217
    %2549 = vmatpush1.bf16.msra.mxu0 %v2216
    %2550 = vmatprep.subr.bf16.mxu0 %v2225
    %2551 = vmatpush1.bf16.msra.mxu0 %v2224
    %2552 = vmatprep.subr.bf16.mxu0 %v2233
    %2553 = vmatpush1.bf16.msra.mxu0 %v2232
    %2554 = vmatprep.subr.bf16.mxu0 %v2241
    %2555 = vmatpush1.bf16.msra.mxu0 %v2240
    %2556 = vmatprep.subr.bf16.mxu0 %v2249
    %2557 = vmatpush1.bf16.msra.mxu0 %v2248
    %2558 = vmatprep.subr.bf16.mxu0 %v2257
    %2559 = vmatpush1.bf16.msra.mxu0 %v2256
    %2560 = vmatprep.subr.bf16.mxu0 %v2265
    %2561 = vmatpush1.bf16.msra.mxu0 %v2264
    %2562 = vmatprep.subr.bf16.mxu0 %v2273
    %2563 = vmatpush1.bf16.msra.mxu0 %v2272
    %2564 = vmatprep.subr.bf16.mxu0 %v2281
    %2565 = vmatpush1.bf16.msra.mxu0 %v2280
    %2566 = vmatprep.subr.bf16.mxu0 %v2289
    %2567 = vmatpush1.bf16.msra.mxu0 %v2288
    %2568 = vmatprep.mubr.bf16.mxu0 %v460
    %2569 = vmatmul.mubr.bf16.gmra.mrb[0].mxu0 %v453
    %v2570 = vpop.f32.mrb[0].mxu0
    %v2571 = vadd.f32 0.0, %v2570
    %v2572 = vpop.f32.mrb[0].mxu0
    %v2573 = vadd.f32 0.0, %v2572
    %v2574 = vpop.f32.mrb[0].mxu0
    %v2575 = vpop.f32.mrb[0].mxu0
    %2576 = vdwg.mxu0
    %2577 = vmatprep.subr.bf16.mxu0 %v2297
    %2578 = vmatpush1.bf16.msra.mxu0 %v2296
    %2579 = vmatprep.subr.bf16.mxu0 %v2305
    %2580 = vmatpush1.bf16.msra.mxu0 %v2304
    %2581 = vmatprep.subr.bf16.mxu0 0
    %2582 = vmatpush1.bf16.msra.mxu0 0
    %2583 = vmatprep.subr.bf16.mxu0 0
    %2584 = vmatpush1.bf16.msra.mxu0 0
    %2585 = vmatprep.subr.bf16.mxu0 0
    %2586 = vmatpush1.bf16.msra.mxu0 0
    %2587 = vmatprep.subr.bf16.mxu0 0
    %2588 = vmatpush1.bf16.msra.mxu0 0
    %2589 = vmatprep.subr.bf16.mxu0 0
    %2590 = vmatpush1.bf16.msra.mxu0 0
    %2591 = vmatprep.subr.bf16.mxu0 0
    %2592 = vmatpush1.bf16.msra.mxu0 0
    %2593 = vmatprep.subr.bf16.mxu0 0
    %2594 = vmatpush1.bf16.msra.mxu0 0
    %2595 = vmatprep.subr.bf16.mxu0 0
    %2596 = vmatpush1.bf16.msra.mxu0 0
    %2597 = vmatprep.subr.bf16.mxu0 0
    %2598 = vmatpush1.bf16.msra.mxu0 0
    %2599 = vmatprep.subr.bf16.mxu0 0
    %2600 = vmatpush1.bf16.msra.mxu0 0
    %2601 = vmatprep.subr.bf16.mxu0 0
    %2602 = vmatpush1.bf16.msra.mxu0 0
    %2603 = vmatprep.subr.bf16.mxu0 0
    %2604 = vmatpush1.bf16.msra.mxu0 0
    %2605 = vmatprep.subr.bf16.mxu0 0
    %2606 = vmatpush1.bf16.msra.mxu0 0
    %2607 = vmatprep.subr.bf16.mxu0 0
    %2608 = vmatpush1.bf16.msra.mxu0 0
    %2609 = vmatprep.mubr.bf16.mxu0 0
    %2610 = vmatmul.mubr.bf16.gmra.mrb[0].mxu0 %v1185
    %v2611 = vpop.f32.mrb[0].mxu0
    %v2612 = vadd.f32 %v2571, %v2611
    %v2613 = vpop.f32.mrb[0].mxu0
    %v2614 = vadd.f32 %v2573, %v2613
    %v2615 = vpop.f32.mrb[0].mxu0
    %v2616 = vpop.f32.mrb[0].mxu0
    %2617 = vdwg.mxu0
    %2618 = vmatprep.subr.bf16.mxu0 %v2171
    %2619 = vmatpush1.bf16.msra.mxu0 %v2170
    %2620 = vmatprep.subr.bf16.mxu0 %v2179
    %2621 = vmatpush1.bf16.msra.mxu0 %v2178
    %2622 = vmatprep.subr.bf16.mxu0 %v2187
    %2623 = vmatpush1.bf16.msra.mxu0 %v2186
    %2624 = vmatprep.subr.bf16.mxu0 %v2195
    %2625 = vmatpush1.bf16.msra.mxu0 %v2194
    %2626 = vmatprep.subr.bf16.mxu0 %v2203
    %2627 = vmatpush1.bf16.msra.mxu0 %v2202
    %2628 = vmatprep.subr.bf16.mxu0 %v2211
    %2629 = vmatpush1.bf16.msra.mxu0 %v2210
    %2630 = vmatprep.subr.bf16.mxu0 %v2219
    %2631 = vmatpush1.bf16.msra.mxu0 %v2218
    %2632 = vmatprep.subr.bf16.mxu0 %v2227
    %2633 = vmatpush1.bf16.msra.mxu0 %v2226
    %2634 = vmatprep.subr.bf16.mxu0 %v2235
    %2635 = vmatpush1.bf16.msra.mxu0 %v2234
    %2636 = vmatprep.subr.bf16.mxu0 %v2243
    %2637 = vmatpush1.bf16.msra.mxu0 %v2242
    %2638 = vmatprep.subr.bf16.mxu0 %v2251
    %2639 = vmatpush1.bf16.msra.mxu0 %v2250
    %2640 = vmatprep.subr.bf16.mxu0 %v2259
    %2641 = vmatpush1.bf16.msra.mxu0 %v2258
    %2642 = vmatprep.subr.bf16.mxu0 %v2267
    %2643 = vmatpush1.bf16.msra.mxu0 %v2266
    %2644 = vmatprep.subr.bf16.mxu0 %v2275
    %2645 = vmatpush1.bf16.msra.mxu0 %v2274
    %2646 = vmatprep.subr.bf16.mxu0 %v2283
    %2647 = vmatpush1.bf16.msra.mxu0 %v2282
    %2648 = vmatprep.subr.bf16.mxu0 %v2291
    %2649 = vmatpush1.bf16.msra.mxu0 %v2290
    %2650 = vmatprep.mubr.bf16.mxu0 %v460
    %2651 = vmatmul.mubr.bf16.gmra.mrb[0].mxu0 %v453
    %v2652 = vpop.f32.mrb[0].mxu0
    %v2653 = vadd.f32 0.0, %v2652
    %v2654 = vpop.f32.mrb[0].mxu0
    %v2655 = vadd.f32 0.0, %v2654
    %v2656 = vpop.f32.mrb[0].mxu0
    %v2657 = vpop.f32.mrb[0].mxu0
    %2658 = vdwg.mxu0
    %2659 = vmatprep.subr.bf16.mxu0 %v2299
    %2660 = vmatpush1.bf16.msra.mxu0 %v2298
    %2661 = vmatprep.subr.bf16.mxu0 %v2307
    %2662 = vmatpush1.bf16.msra.mxu0 %v2306
    %2663 = vmatprep.subr.bf16.mxu0 0
    %2664 = vmatpush1.bf16.msra.mxu0 0
    %2665 = vmatprep.subr.bf16.mxu0 0
    %2666 = vmatpush1.bf16.msra.mxu0 0
    %2667 = vmatprep.subr.bf16.mxu0 0
    %2668 = vmatpush1.bf16.msra.mxu0 0
    %2669 = vmatprep.subr.bf16.mxu0 0
    %2670 = vmatpush1.bf16.msra.mxu0 0
    %2671 = vmatprep.subr.bf16.mxu0 0
    %2672 = vmatpush1.bf16.msra.mxu0 0
    %2673 = vmatprep.subr.bf16.mxu0 0
    %2674 = vmatpush1.bf16.msra.mxu0 0
    %2675 = vmatprep.subr.bf16.mxu0 0
    %2676 = vmatpush1.bf16.msra.mxu0 0
    %2677 = vmatprep.subr.bf16.mxu0 0
    %2678 = vmatpush1.bf16.msra.mxu0 0
    %2679 = vmatprep.subr.bf16.mxu0 0
    %2680 = vmatpush1.bf16.msra.mxu0 0
    %2681 = vmatprep.subr.bf16.mxu0 0
    %2682 = vmatpush1.bf16.msra.mxu0 0
    %2683 = vmatprep.subr.bf16.mxu0 0
    %2684 = vmatpush1.bf16.msra.mxu0 0
    %2685 = vmatprep.subr.bf16.mxu0 0
    %2686 = vmatpush1.bf16.msra.mxu0 0
    %2687 = vmatprep.subr.bf16.mxu0 0
    %2688 = vmatpush1.bf16.msra.mxu0 0
    %2689 = vmatprep.subr.bf16.mxu0 0
    %2690 = vmatpush1.bf16.msra.mxu0 0
    %2691 = vmatprep.mubr.bf16.mxu0 0
    %2692 = vmatmul.mubr.bf16.gmra.mrb[0].mxu0 %v1185
    %v2693 = vpop.f32.mrb[0].mxu0
    %v2694 = vadd.f32 %v2653, %v2693
    %v2695 = vpop.f32.mrb[0].mxu0
    %v2696 = vadd.f32 %v2655, %v2695
    %v2697 = vpop.f32.mrb[0].mxu0
    %v2698 = vpop.f32.mrb[0].mxu0
    %2699 = vdwg.mxu0
    %2700 = vmatprep.subr.bf16.mxu0 %v2173
    %2701 = vmatpush1.bf16.msra.mxu0 %v2172
    %2702 = vmatprep.subr.bf16.mxu0 %v2181
    %2703 = vmatpush1.bf16.msra.mxu0 %v2180
    %2704 = vmatprep.subr.bf16.mxu0 %v2189
    %2705 = vmatpush1.bf16.msra.mxu0 %v2188
    %2706 = vmatprep.subr.bf16.mxu0 %v2197
    %2707 = vmatpush1.bf16.msra.mxu0 %v2196
    %2708 = vmatprep.subr.bf16.mxu0 %v2205
    %2709 = vmatpush1.bf16.msra.mxu0 %v2204
    %2710 = vmatprep.subr.bf16.mxu0 %v2213
    %2711 = vmatpush1.bf16.msra.mxu0 %v2212
    %2712 = vmatprep.subr.bf16.mxu0 %v2221
    %2713 = vmatpush1.bf16.msra.mxu0 %v2220
    %2714 = vmatprep.subr.bf16.mxu0 %v2229
    %2715 = vmatpush1.bf16.msra.mxu0 %v2228
    %2716 = vmatprep.subr.bf16.mxu0 %v2237
    %2717 = vmatpush1.bf16.msra.mxu0 %v2236
    %2718 = vmatprep.subr.bf16.mxu0 %v2245
    %2719 = vmatpush1.bf16.msra.mxu0 %v2244
    %2720 = vmatprep.subr.bf16.mxu0 %v2253
    %2721 = vmatpush1.bf16.msra.mxu0 %v2252
    %2722 = vmatprep.subr.bf16.mxu0 %v2261
    %2723 = vmatpush1.bf16.msra.mxu0 %v2260
    %2724 = vmatprep.subr.bf16.mxu0 %v2269
    %2725 = vmatpush1.bf16.msra.mxu0 %v2268
    %2726 = vmatprep.subr.bf16.mxu0 %v2277
    %2727 = vmatpush1.bf16.msra.mxu0 %v2276
    %2728 = vmatprep.subr.bf16.mxu0 %v2285
    %2729 = vmatpush1.bf16.msra.mxu0 %v2284
    %2730 = vmatprep.subr.bf16.mxu0 %v2293
    %2731 = vmatpush1.bf16.msra.mxu0 %v2292
    %2732 = vmatprep.mubr.bf16.mxu0 %v460
    %2733 = vmatmul.mubr.bf16.gmra.mrb[0].mxu0 %v453
    %v2734 = vpop.f32.mrb[0].mxu0
    %v2735 = vadd.f32 0.0, %v2734
    %v2736 = vpop.f32.mrb[0].mxu0
    %v2737 = vadd.f32 0.0, %v2736
    %v2738 = vpop.f32.mrb[0].mxu0
    %v2739 = vpop.f32.mrb[0].mxu0
    %2740 = vdwg.mxu0
    %2741 = vmatprep.subr.bf16.mxu0 %v2301
    %2742 = vmatpush1.bf16.msra.mxu0 %v2300
    %2743 = vmatprep.subr.bf16.mxu0 %v2309
    %2744 = vmatpush1.bf16.msra.mxu0 %v2308
    %2745 = vmatprep.subr.bf16.mxu0 0
    %2746 = vmatpush1.bf16.msra.mxu0 0
    %2747 = vmatprep.subr.bf16.mxu0 0
    %2748 = vmatpush1.bf16.msra.mxu0 0
    %2749 = vmatprep.subr.bf16.mxu0 0
    %2750 = vmatpush1.bf16.msra.mxu0 0
    %2751 = vmatprep.subr.bf16.mxu0 0
    %2752 = vmatpush1.bf16.msra.mxu0 0
    %2753 = vmatprep.subr.bf16.mxu0 0
    %2754 = vmatpush1.bf16.msra.mxu0 0
    %2755 = vmatprep.subr.bf16.mxu0 0
    %2756 = vmatpush1.bf16.msra.mxu0 0
    %2757 = vmatprep.subr.bf16.mxu0 0
    %2758 = vmatpush1.bf16.msra.mxu0 0
    %2759 = vmatprep.subr.bf16.mxu0 0
    %2760 = vmatpush1.bf16.msra.mxu0 0
    %2761 = vmatprep.subr.bf16.mxu0 0
    %2762 = vmatpush1.bf16.msra.mxu0 0
    %2763 = vmatprep.subr.bf16.mxu0 0
    %2764 = vmatpush1.bf16.msra.mxu0 0
    %2765 = vmatprep.subr.bf16.mxu0 0
    %2766 = vmatpush1.bf16.msra.mxu0 0
    %2767 = vmatprep.subr.bf16.mxu0 0
    %2768 = vmatpush1.bf16.msra.mxu0 0
    %2769 = vmatprep.subr.bf16.mxu0 0
    %2770 = vmatpush1.bf16.msra.mxu0 0
    %2771 = vmatprep.subr.bf16.mxu0 0
    %2772 = vmatpush1.bf16.msra.mxu0 0
    %2773 = vmatprep.mubr.bf16.mxu0 0
    %2774 = vmatmul.mubr.bf16.gmra.mrb[0].mxu0 %v1185
    %v2775 = vpop.f32.mrb[0].mxu0
    %v2776 = vadd.f32 %v2735, %v2775
    %v2777 = vpop.f32.mrb[0].mxu0
    %v2778 = vadd.f32 %v2737, %v2777
    %v2779 = vpop.f32.mrb[0].mxu0
    %v2780 = vpop.f32.mrb[0].mxu0
    %2781 = vdwg.mxu0
    %v2782 = vmax.f32 %v2530, %v2694
    %v2783 = vmax.f32 %v2532, %v2696
    %v2784 = vmax.f32 %v2612, %v2776
    %v2785 = vmax.f32 %v2614, %v2778
    %v2786 = vmax.f32 %v2782, %v2784
    %v2787 = vmax.f32 %v2783, %v2785
    %v2788 = vmax.f32 %v2786, %v2787
    %2790 = vrot.lane.b32.xlu0 %v2788, 64
    %v2791 = vpop.permute.xlu0 %2790
    %v2793 = vmax.f32 %v2788, %v2791
    %2795 = vrot.lane.b32.xlu0 %v2793, 96
    %v2796 = vpop.permute.xlu0 %2795
    %v2798 = vmax.f32 %v2793, %v2796
    %v2799 = vld [vmem:[%s7] sm:$0x1]
    %v2801 = vlaneseq
    %v2802 = vshrl.u32 %v2801, 7
    %v2803 = vsub.s32 0, %v2802
    %v2804 = vrot.slane %v2799, %v2803
    %v2806 = vadd.f32 %v2798, %v2804
    %v2807 = vmax.f32 %v2806, 0.0
    %v2808 = vpack.c.bf16 %v2807, %v2807
    %v2809 = vld [vmem:[#allocation10] sm:$0xff]
    %v2810 = vld [vmem:[#allocation10 + $0x8] sm:$0xff]
    %v2811 = vld [vmem:[#allocation10 + $0x10] sm:$0xff]
    %v2812 = vld [vmem:[#allocation10 + $0x18] sm:$0xff]
    %v2813 = vld [vmem:[#allocation10 + $0x20] sm:$0xff]
    %v2814 = vld [vmem:[#allocation10 + $0x28] sm:$0xff]
    %v2815 = vld [vmem:[#allocation10 + $0x30] sm:$0xff]
    %v2816 = vld [vmem:[#allocation10 + $0x38] sm:$0xff]
    %v2817 = vld [vmem:[#allocation10 + $0x40] sm:$0xff]
    %v2818 = vld [vmem:[#allocation10 + $0x48] sm:$0xff]
    %v2819 = vld [vmem:[#allocation10 + $0x50] sm:$0xff]
    %v2820 = vld [vmem:[#allocation10 + $0x58] sm:$0xff]
    %v2821 = vld [vmem:[#allocation10 + $0x60] sm:$0xff]
    %v2822 = vld [vmem:[#allocation10 + $0x68] sm:$0xff]
    %v2823 = vld [vmem:[#allocation10 + $0x70] sm:$0xff]
    %v2824 = vld [vmem:[#allocation10 + $0x78] sm:$0xff]
    %v2841 = vunpack.c.l.b16 %v2809
    %v2842 = vunpack.c.h.b16 %v2809
    %v2843 = vunpack.c.l.b16 %v2810
    %v2844 = vunpack.c.h.b16 %v2810
    %v2845 = vunpack.c.l.b16 %v2811
    %v2846 = vunpack.c.h.b16 %v2811
    %v2847 = vunpack.c.l.b16 %v2812
    %v2848 = vunpack.c.h.b16 %v2812
    %v2849 = vunpack.c.l.b16 %v2813
    %v2850 = vunpack.c.h.b16 %v2813
    %v2851 = vunpack.c.l.b16 %v2814
    %v2852 = vunpack.c.h.b16 %v2814
    %v2853 = vunpack.c.l.b16 %v2815
    %v2854 = vunpack.c.h.b16 %v2815
    %v2855 = vunpack.c.l.b16 %v2816
    %v2856 = vunpack.c.h.b16 %v2816
    %v2857 = vunpack.c.l.b16 %v2817
    %v2858 = vunpack.c.h.b16 %v2817
    %v2859 = vunpack.c.l.b16 %v2818
    %v2860 = vunpack.c.h.b16 %v2818
    %v2861 = vunpack.c.l.b16 %v2819
    %v2862 = vunpack.c.h.b16 %v2819
    %v2863 = vunpack.c.l.b16 %v2820
    %v2864 = vunpack.c.h.b16 %v2820
    %v2865 = vunpack.c.l.b16 %v2821
    %v2866 = vunpack.c.h.b16 %v2821
    %v2867 = vunpack.c.l.b16 %v2822
    %v2868 = vunpack.c.h.b16 %v2822
    %v2869 = vunpack.c.l.b16 %v2823
    %v2870 = vunpack.c.h.b16 %v2823
    %v2871 = vunpack.c.l.b16 %v2824
    %v2872 = vunpack.c.h.b16 %v2824
    %v2873 = vpack.c.b16 %v2849, %v2841
    %v2874 = vpack.c.b16 %v2850, %v2842
    %v2875 = vpack.c.b16 %v2851, %v2843
    %v2876 = vpack.c.b16 %v2852, %v2844
    %v2877 = vpack.c.b16 %v2853, %v2845
    %v2878 = vpack.c.b16 %v2854, %v2846
    %v2879 = vpack.c.b16 %v2855, %v2847
    %v2880 = vpack.c.b16 %v2856, %v2848
    %v2881 = vpack.c.b16 %v2865, %v2857
    %v2882 = vpack.c.b16 %v2866, %v2858
    %v2883 = vpack.c.b16 %v2867, %v2859
    %v2884 = vpack.c.b16 %v2868, %v2860
    %v2885 = vpack.c.b16 %v2869, %v2861
    %v2886 = vpack.c.b16 %v2870, %v2862
    %v2887 = vpack.c.b16 %v2871, %v2863
    %v2888 = vpack.c.b16 %v2872, %v2864
    %v2906 = vsel %vm140, %v2808, 0
    %2908 = vmatprep.subr.bf16.mxu0 %v2874
    %2909 = vmatpush1.bf16.msra.mxu0 %v2873
    %2910 = vmatprep.subr.bf16.mxu0 %v2882
    %2911 = vmatpush1.bf16.msra.mxu0 %v2881
    %2912 = vmatprep.subr.bf16.mxu0 0
    %2913 = vmatpush1.bf16.msra.mxu0 0
    %2914 = vmatprep.subr.bf16.mxu0 0
    %2915 = vmatpush1.bf16.msra.mxu0 0
    %2916 = vmatprep.subr.bf16.mxu0 0
    %2917 = vmatpush1.bf16.msra.mxu0 0
    %2918 = vmatprep.subr.bf16.mxu0 0
    %2919 = vmatpush1.bf16.msra.mxu0 0
    %2920 = vmatprep.subr.bf16.mxu0 0
    %2921 = vmatpush1.bf16.msra.mxu0 0
    %2922 = vmatprep.subr.bf16.mxu0 0
    %2923 = vmatpush1.bf16.msra.mxu0 0
    %2924 = vmatprep.subr.bf16.mxu0 0
    %2925 = vmatpush1.bf16.msra.mxu0 0
    %2926 = vmatprep.subr.bf16.mxu0 0
    %2927 = vmatpush1.bf16.msra.mxu0 0
    %2928 = vmatprep.subr.bf16.mxu0 0
    %2929 = vmatpush1.bf16.msra.mxu0 0
    %2930 = vmatprep.subr.bf16.mxu0 0
    %2931 = vmatpush1.bf16.msra.mxu0 0
    %2932 = vmatprep.subr.bf16.mxu0 0
    %2933 = vmatpush1.bf16.msra.mxu0 0
    %2934 = vmatprep.subr.bf16.mxu0 0
    %2935 = vmatpush1.bf16.msra.mxu0 0
    %2936 = vmatprep.subr.bf16.mxu0 0
    %2937 = vmatpush1.bf16.msra.mxu0 0
    %2938 = vmatprep.subr.bf16.mxu0 0
    %2939 = vmatpush1.bf16.msra.mxu0 0
    %2940 = vmatprep.mubr.bf16.mxu0 0
    %2941 = vmatmul.mubr.bf16.gmra.mrb[0].mxu0 %v2906
    %v2942 = vpop.f32.mrb[0].mxu0
    %v2943 = vadd.f32 0.0, %v2942
    %v2944 = vpop.f32.mrb[0].mxu0
    %v2945 = vadd.f32 0.0, %v2944
    %v2946 = vpop.f32.mrb[0].mxu0
    %v2947 = vpop.f32.mrb[0].mxu0
    %2948 = vdwg.mxu0
    %2949 = vmatprep.subr.bf16.mxu0 %v2876
    %2950 = vmatpush1.bf16.msra.mxu0 %v2875
    %2951 = vmatprep.subr.bf16.mxu0 %v2884
    %2952 = vmatpush1.bf16.msra.mxu0 %v2883
    %2953 = vmatprep.subr.bf16.mxu0 0
    %2954 = vmatpush1.bf16.msra.mxu0 0
    %2955 = vmatprep.subr.bf16.mxu0 0
    %2956 = vmatpush1.bf16.msra.mxu0 0
    %2957 = vmatprep.subr.bf16.mxu0 0
    %2958 = vmatpush1.bf16.msra.mxu0 0
    %2959 = vmatprep.subr.bf16.mxu0 0
    %2960 = vmatpush1.bf16.msra.mxu0 0
    %2961 = vmatprep.subr.bf16.mxu0 0
    %2962 = vmatpush1.bf16.msra.mxu0 0
    %2963 = vmatprep.subr.bf16.mxu0 0
    %2964 = vmatpush1.bf16.msra.mxu0 0
    %2965 = vmatprep.subr.bf16.mxu0 0
    %2966 = vmatpush1.bf16.msra.mxu0 0
    %2967 = vmatprep.subr.bf16.mxu0 0
    %2968 = vmatpush1.bf16.msra.mxu0 0
    %2969 = vmatprep.subr.bf16.mxu0 0
    %2970 = vmatpush1.bf16.msra.mxu0 0
    %2971 = vmatprep.subr.bf16.mxu0 0
    %2972 = vmatpush1.bf16.msra.mxu0 0
    %2973 = vmatprep.subr.bf16.mxu0 0
    %2974 = vmatpush1.bf16.msra.mxu0 0
    %2975 = vmatprep.subr.bf16.mxu0 0
    %2976 = vmatpush1.bf16.msra.mxu0 0
    %2977 = vmatprep.subr.bf16.mxu0 0
    %2978 = vmatpush1.bf16.msra.mxu0 0
    %2979 = vmatprep.subr.bf16.mxu0 0
    %2980 = vmatpush1.bf16.msra.mxu0 0
    %2981 = vmatprep.mubr.bf16.mxu0 0
    %2982 = vmatmul.mubr.bf16.gmra.mrb[0].mxu0 %v2906
    %v2983 = vpop.f32.mrb[0].mxu0
    %v2984 = vadd.f32 0.0, %v2983
    %v2985 = vpop.f32.mrb[0].mxu0
    %v2986 = vadd.f32 0.0, %v2985
    %v2987 = vpop.f32.mrb[0].mxu0
    %v2988 = vpop.f32.mrb[0].mxu0
    %2989 = vdwg.mxu0
    %2990 = vmatprep.subr.bf16.mxu0 %v2878
    %2991 = vmatpush1.bf16.msra.mxu0 %v2877
    %2992 = vmatprep.subr.bf16.mxu0 %v2886
    %2993 = vmatpush1.bf16.msra.mxu0 %v2885
    %2994 = vmatprep.subr.bf16.mxu0 0
    %2995 = vmatpush1.bf16.msra.mxu0 0
    %2996 = vmatprep.subr.bf16.mxu0 0
    %2997 = vmatpush1.bf16.msra.mxu0 0
    %2998 = vmatprep.subr.bf16.mxu0 0
    %2999 = vmatpush1.bf16.msra.mxu0 0
    %3000 = vmatprep.subr.bf16.mxu0 0
    %3001 = vmatpush1.bf16.msra.mxu0 0
    %3002 = vmatprep.subr.bf16.mxu0 0
    %3003 = vmatpush1.bf16.msra.mxu0 0
    %3004 = vmatprep.subr.bf16.mxu0 0
    %3005 = vmatpush1.bf16.msra.mxu0 0
    %3006 = vmatprep.subr.bf16.mxu0 0
    %3007 = vmatpush1.bf16.msra.mxu0 0
    %3008 = vmatprep.subr.bf16.mxu0 0
    %3009 = vmatpush1.bf16.msra.mxu0 0
    %3010 = vmatprep.subr.bf16.mxu0 0
    %3011 = vmatpush1.bf16.msra.mxu0 0
    %3012 = vmatprep.subr.bf16.mxu0 0
    %3013 = vmatpush1.bf16.msra.mxu0 0
    %3014 = vmatprep.subr.bf16.mxu0 0
    %3015 = vmatpush1.bf16.msra.mxu0 0
    %3016 = vmatprep.subr.bf16.mxu0 0
    %3017 = vmatpush1.bf16.msra.mxu0 0
    %3018 = vmatprep.subr.bf16.mxu0 0
    %3019 = vmatpush1.bf16.msra.mxu0 0
    %3020 = vmatprep.subr.bf16.mxu0 0
    %3021 = vmatpush1.bf16.msra.mxu0 0
    %3022 = vmatprep.mubr.bf16.mxu0 0
    %3023 = vmatmul.mubr.bf16.gmra.mrb[0].mxu0 %v2906
    %v3024 = vpop.f32.mrb[0].mxu0
    %v3025 = vadd.f32 0.0, %v3024
    %v3026 = vpop.f32.mrb[0].mxu0
    %v3027 = vadd.f32 0.0, %v3026
    %v3028 = vpop.f32.mrb[0].mxu0
    %v3029 = vpop.f32.mrb[0].mxu0
    %3030 = vdwg.mxu0
    %3031 = vmatprep.subr.bf16.mxu0 %v2880
    %3032 = vmatpush1.bf16.msra.mxu0 %v2879
    %3033 = vmatprep.subr.bf16.mxu0 %v2888
    %3034 = vmatpush1.bf16.msra.mxu0 %v2887
    %3035 = vmatprep.subr.bf16.mxu0 0
    %3036 = vmatpush1.bf16.msra.mxu0 0
    %3037 = vmatprep.subr.bf16.mxu0 0
    %3038 = vmatpush1.bf16.msra.mxu0 0
    %3039 = vmatprep.subr.bf16.mxu0 0
    %3040 = vmatpush1.bf16.msra.mxu0 0
    %3041 = vmatprep.subr.bf16.mxu0 0
    %3042 = vmatpush1.bf16.msra.mxu0 0
    %3043 = vmatprep.subr.bf16.mxu0 0
    %3044 = vmatpush1.bf16.msra.mxu0 0
    %3045 = vmatprep.subr.bf16.mxu0 0
    %3046 = vmatpush1.bf16.msra.mxu0 0
    %3047 = vmatprep.subr.bf16.mxu0 0
    %3048 = vmatpush1.bf16.msra.mxu0 0
    %3049 = vmatprep.subr.bf16.mxu0 0
    %3050 = vmatpush1.bf16.msra.mxu0 0
    %3051 = vmatprep.subr.bf16.mxu0 0
    %3052 = vmatpush1.bf16.msra.mxu0 0
    %3053 = vmatprep.subr.bf16.mxu0 0
    %3054 = vmatpush1.bf16.msra.mxu0 0
    %3055 = vmatprep.subr.bf16.mxu0 0
    %3056 = vmatpush1.bf16.msra.mxu0 0
    %3057 = vmatprep.subr.bf16.mxu0 0
    %3058 = vmatpush1.bf16.msra.mxu0 0
    %3059 = vmatprep.subr.bf16.mxu0 0
    %3060 = vmatpush1.bf16.msra.mxu0 0
    %3061 = vmatprep.subr.bf16.mxu0 0
    %3062 = vmatpush1.bf16.msra.mxu0 0
    %3063 = vmatprep.mubr.bf16.mxu0 0
    %3064 = vmatmul.mubr.bf16.gmra.mrb[0].mxu0 %v2906
    %v3065 = vpop.f32.mrb[0].mxu0
    %v3066 = vadd.f32 0.0, %v3065
    %v3067 = vpop.f32.mrb[0].mxu0
    %v3068 = vadd.f32 0.0, %v3067
    %v3069 = vpop.f32.mrb[0].mxu0
    %v3070 = vpop.f32.mrb[0].mxu0
    %3071 = vdwg.mxu0
    %v3072 = vpack.c.bf16 %v2943, %v2943
    %v3073 = vpack.c.bf16 %v2945, %v2945
    %v3074 = vpack.c.bf16 %v2984, %v2984
    %v3075 = vpack.c.bf16 %v2986, %v2986
    %v3076 = vpack.c.bf16 %v3025, %v3025
    %v3077 = vpack.c.bf16 %v3027, %v3027
    %v3078 = vpack.c.bf16 %v3066, %v3066
    %v3079 = vpack.c.bf16 %v3068, %v3068
    %v3088 = vcombine.low %v3072, %v3073
    %v3089 = vcombine.low %v3074, %v3075
    %v3090 = vcombine.low %v3076, %v3077
    %v3091 = vcombine.low %v3078, %v3079
    %v3093 = vunpack.c.l.s4 1966171168
    %v3094 = vunpack.c.0.s8 %v3093
    %v3095 = vlaneseq
    %v3096 = vshrl.u32 %v3095, 7
    %v3097 = vsub.s32 %v3094, %v3096
    %v3098 = vrot.slane %v3088, %v3097
    %v3100 = vunpack.c.l.s4 1966171168
    %v3101 = vunpack.c.0.s8 %v3100
    %v3102 = vlaneseq
    %v3103 = vshrl.u32 %v3102, 7
    %v3104 = vsub.s32 %v3101, %v3103
    %v3105 = vrot.slane %v3089, %v3104
    %v3107 = vunpack.c.l.s4 1966171168
    %v3108 = vunpack.c.0.s8 %v3107
    %v3109 = vlaneseq
    %v3110 = vshrl.u32 %v3109, 7
    %v3111 = vsub.s32 %v3108, %v3110
    %v3112 = vrot.slane %v3090, %v3111
    %v3114 = vunpack.c.l.s4 1966171168
    %v3115 = vunpack.c.0.s8 %v3114
    %v3116 = vlaneseq
    %v3117 = vshrl.u32 %v3116, 7
    %v3118 = vsub.s32 %v3115, %v3117
    %v3119 = vrot.slane %v3091, %v3118
    %v3120 = vcombine.low %v3098, %v3105
    %v3121 = vcombine.low %v3112, %v3119
    %v3123 = vunpack.c.l.s4 1966171168
    %v3124 = vunpack.c.0.s8 %v3123
    %v3125 = vlaneseq
    %v3126 = vshrl.u32 %v3125, 7
    %v3127 = vsub.s32 %v3124, %v3126
    %v3128 = vrot.slane %v3120, %v3127
    %v3130 = vunpack.c.l.s4 1966171168
    %v3131 = vunpack.c.0.s8 %v3130
    %v3132 = vlaneseq
    %v3133 = vshrl.u32 %v3132, 7
    %v3134 = vsub.s32 %v3131, %v3133
    %v3135 = vrot.slane %v3121, %v3134
    %v3136 = vcombine.low %v3128, %v3135
    %3138 = vst [vmem:[#allocation11 + $0x8] sm:$0xff] %v3136
    // Predicated region
    $region54: #{tpu_custom_call.1} parent=1 // pred_check
      _
    $region55: #{tpu_custom_call.1} parent=1 // pred_check_branch
      %3140 = sbr.rel (0) target = $region57
    $region56: #{tpu_custom_call.1} parent=1 // pred_region
      %s3142 = ssub.s32 256, 256
      %3143 = vsyncadd [#allocation4], %s3142
      %s3145 = sshll.u32 [#allocation11], 4
      %s3146 = int_to_ptr.vmem [resolvable:$true] %s3145
      %3148 = dma.vmem_to_hbm [thread:$0]  %s3146, 256, %s8, [#allocation4]
    $region57: #{tpu_custom_call.1} parent=1 // pred_fallthru
      _
    // Predicated region
    $region58: #{tpu_custom_call.1} parent=1 // pred_check
      _
    $region59: #{tpu_custom_call.1} parent=1 // pred_check_branch
      %3150 = sbr.rel (0) target = $region61
    $region60: #{tpu_custom_call.1} parent=1 // pred_region
      %3151 = dma.done [#allocation4], 256
    $region61: #{tpu_custom_call.1} parent=1 // pred_fallthru
      _
    %3152 = vsyncpa [#allocation3], 1
    %3153 = vsyncpa [#allocation6], 1
    %3154 = vsyncpa [#allocation9], 1
    %3155 = vsyncpa [#allocation4], 1

</llo_original>
